<compile_context>
chip_gen: v5e
topology: v5e:2x2
jax: 0.10.0
libtpu: 0.0.40
codegen_flags: <defaults>
</compile_context>

<pallas_src>
import functools
import math

import jax
import jax.numpy as jnp
import numpy as np
from jax.experimental import pallas as pl
from jax.experimental.pallas import tpu as pltpu


# ----------------------------------------------------------------------------
# Fused kernel: one batch-block (Bt sequences) per grid step.
# ----------------------------------------------------------------------------
def _bert_attention_kernel(h_ref, kv_ref, mask_ref,
                           wq_ref, bq_ref, wk_ref, wv_ref, bv_ref,
                           wo_ref, bo_ref, gamma_ref, beta_ref,
                           out_ref, *maybe_probs,
                           batch_block, num_heads, head_dim,
                           seq_q, seq_k, ln_eps):
    # Ref shapes:
    #   h_ref    : (Bt*Sq, H) f32   query-side rows (also the residual input)
    #   kv_ref   : (Bt*Sk, H) f32   key/value-side rows
    #   mask_ref : (Bt, 1, Sk) f32  additive attention mask (0 / -10000)
    #   wq/wk/wv : (H, H) bf16 ("x @ W" orientation), bq/bv: (1, H) f32
    #   wo_ref   : (nH, dH, H) bf16 (per-head slices of the output dense)
    #   bo/gamma/beta : (1, H) f32
    #   out_ref  : (Bt*Sq, H)
    #   probs_ref: (Bt*nH, Sq, Sk)  (optional)
    probs_ref = maybe_probs[0] if maybe_probs else None
    hidden = num_heads * head_dim

    # ---- Q/K/V projections over the whole row block (large MXU M, bf16) ----
    x_f32 = h_ref[...]                                    # f32, kept for residual
    x = x_f32.astype(jnp.bfloat16)
    kv = kv_ref[...].astype(jnp.bfloat16)

    scale = 1.0 / math.sqrt(head_dim)
    q = jnp.dot(x, wq_ref[...], preferred_element_type=jnp.float32) + bq_ref[...]
    # K bias intentionally dropped: it shifts every key score of a query row by
    # the same constant, which softmax is invariant to.
    k = jnp.dot(kv, wk_ref[...], preferred_element_type=jnp.float32)
    v = jnp.dot(kv, wv_ref[...], preferred_element_type=jnp.float32) + bv_ref[...]

    q = (q * scale).astype(jnp.bfloat16)   # fold 1/sqrt(dH) into Q once
    k = k.astype(jnp.bfloat16)
    v = v.astype(jnp.bfloat16)

    mask_all = mask_ref[...]                              # (Bt, 1, Sk)

    # TODO(synk): for very long sequences (v7x 64 MiB VMEM) add an Sk grid axis
    # with online (flash-style) softmax instead of full K/V / scores residency.
    for b in range(batch_block):
        q_b = q[b * seq_q:(b + 1) * seq_q, :]             # (Sq, H)  sublane slice
        k_b = k[b * seq_k:(b + 1) * seq_k, :]             # (Sk, H)
        v_b = v[b * seq_k:(b + 1) * seq_k, :]
        x_b = x_f32[b * seq_q:(b + 1) * seq_q, :]

        # Mask broadcast hoisted: one broadcast per batch element, all heads reuse.
        mask_b = jnp.broadcast_to(mask_all[b], (seq_q, seq_k))

        proj = jnp.zeros((seq_q, hidden), jnp.float32)

        # Static unroll over heads (nH is small). For larger Sq convert to
        # lax.fori_loop(..., unroll=True) to bound vreg live ranges.
        for h in range(num_heads):
            lo = h * head_dim
            qh = q_b[:, lo:lo + head_dim]                 # (Sq, dH)
            kh = k_b[:, lo:lo + head_dim]                 # (Sk, dH)
            vh = v_b[:, lo:lo + head_dim]                 # (Sk, dH)

            scores = jax.lax.dot_general(                 # q @ k^T  (MXU, bf16)
                qh, kh, (((1,), (1,)), ((), ())),
                preferred_element_type=jnp.float32) + mask_b   # (Sq, Sk)

            m = jnp.max(scores, axis=-1, keepdims=True)
            e = jnp.exp(scores - m)
            denom = jnp.sum(e, axis=-1, keepdims=True)
            probs = e * pl.reciprocal(denom, approx=True)      # EUP, frees VALU
            # TODO(synk): attention-probs dropout is the eval-mode identity.

            if probs_ref is not None:
                probs_ref[b * num_heads + h] = probs.astype(probs_ref.dtype)

            ctx = jnp.dot(probs.astype(jnp.bfloat16), vh,
                          preferred_element_type=jnp.float32)  # (Sq, dH)
            # Accumulate the output projection per head into one lane-dense
            # (Sq, H) tile -> no lane-axis concatenate of head contexts.
            proj = proj + jnp.dot(ctx.astype(jnp.bfloat16), wo_ref[h],
                                  preferred_element_type=jnp.float32)

        # BertSelfOutput: dense bias -> dropout(identity) -> LayerNorm(x + res)
        y = proj + bo_ref[...] + x_b
        mu = jnp.mean(y, axis=-1, keepdims=True)
        yc = y - mu
        var = jnp.mean(yc * yc, axis=-1, keepdims=True)
        out = yc * jax.lax.rsqrt(var + ln_eps) * gamma_ref[...] + beta_ref[...]
        out_ref[b * seq_q:(b + 1) * seq_q, :] = out.astype(out_ref.dtype)


# ----------------------------------------------------------------------------
# Wrapper: one fused pallas_call for the whole BertAttention block.
# ----------------------------------------------------------------------------
def bert_attention_pallas(hidden_states, attention_mask, params,
                          history_states=None, *, num_heads, ln_eps=1e-12,
                          return_probs=True, probs_dtype=jnp.float32):
    """hidden_states: (B, Sq, H) f32; attention_mask: (B, Sk) additive f32.
    Returns attention_output (B, Sq, H) and, if return_probs, attention_probs
    (B, nH, Sq, Sk) in `probs_dtype` (use jnp.bfloat16 to halve its HBM store
    stream when the caller tolerates it)."""
    B, Sq, H = hidden_states.shape
    kv_states = hidden_states if history_states is None else history_states
    Sk = kv_states.shape[1]
    head_dim = H // num_heads
    assert num_heads * head_dim == H

    # --- how many batch elements share one grid step (fills the MXU M dim) ---
    target_rows = 256                       # v6e/v7x MXU height; fine on v5e too
    bt = max(1, min(B, max(1, target_rows // max(Sq, 1))))
    while bt > 1 and B % bt != 0:
        bt -= 1
    if bt < B and ((bt * Sq) % 8 != 0 or (bt * Sk) % 8 != 0):
        bt = B                              # full-batch block is always legal

    # --- flatten rows in the wrapper (free in XLA, no in-kernel reshapes) ---
    h2 = hidden_states.reshape(B * Sq, H).astype(jnp.float32)
    kv2 = kv_states.reshape(B * Sk, H).astype(jnp.float32)
    mask3 = attention_mask.reshape(B, 1, Sk).astype(jnp.float32)

    bf = lambda a: a.astype(jnp.bfloat16)
    wq, wk, wv = bf(params["wq"]), bf(params["wk"]), bf(params["wv"])
    wo3 = bf(params["wo"]).reshape(num_heads, head_dim, H)   # per-head slices
    bq = params["bq"].astype(jnp.float32).reshape(1, H)
    bv = params["bv"].astype(jnp.float32).reshape(1, H)
    bo = params["bo"].astype(jnp.float32).reshape(1, H)
    gamma = params["gamma"].astype(jnp.float32).reshape(1, H)
    beta = params["beta"].astype(jnp.float32).reshape(1, H)

    const2 = lambda r, c: pl.BlockSpec((r, c), lambda i: (0, 0))

    in_specs = [
        pl.BlockSpec((bt * Sq, H), lambda i: (i, 0)),         # hidden rows
        pl.BlockSpec((bt * Sk, H), lambda i: (i, 0)),         # kv rows
        pl.BlockSpec((bt, 1, Sk), lambda i: (i, 0, 0)),       # additive mask
        const2(H, H), const2(1, H),                           # wq, bq
        const2(H, H),                                         # wk  (bk dropped)
        const2(H, H), const2(1, H),                           # wv, bv
        pl.BlockSpec((num_heads, head_dim, H), lambda i: (0, 0, 0)),  # wo
        const2(1, H),                                         # bo
        const2(1, H), const2(1, H),                           # gamma, beta
    ]

    out_shapes = [jax.ShapeDtypeStruct((B * Sq, H), hidden_states.dtype)]
    out_specs = [pl.BlockSpec((bt * Sq, H), lambda i: (i, 0))]
    if return_probs:
        # NOTE: lane dim is Sk; it is only fully dense when Sk % 128 == 0
        # (true for realistic BERT sequence lengths).
        out_shapes.append(
            jax.ShapeDtypeStruct((B * num_heads, Sq, Sk), probs_dtype))
        out_specs.append(
            pl.BlockSpec((bt * num_heads, Sq, Sk), lambda i: (i, 0, 0)))

    kernel = functools.partial(
        _bert_attention_kernel,
        batch_block=bt, num_heads=num_heads, head_dim=head_dim,
        seq_q=Sq, seq_k=Sk, ln_eps=ln_eps)

    results = pl.pallas_call(
        kernel,
        out_shape=tuple(out_shapes),
        grid=(B // bt,),
        in_specs=in_specs,
        out_specs=tuple(out_specs),
        compiler_params=pltpu.CompilerParams(
            dimension_semantics=("parallel",),
            vmem_limit_bytes=64 * 1024 * 1024),
    )(h2, kv2, mask3, wq, bq, wk, wv, bv, wo3, bo, gamma, beta)

    if return_probs:
        out2, probs2 = results
        return (out2.reshape(B, Sq, H),
                probs2.reshape(B, num_heads, Sq, Sk))
    (out2,) = results
    return out2.reshape(B, Sq, H), None


# ----------------------------------------------------------------------------
# Deterministic parameter construction (weights in "x @ W" orientation).
# ----------------------------------------------------------------------------
def make_bert_attention_params(key, hidden_size):
    ks = jax.random.split(key, 10)
    scale = 1.0 / math.sqrt(hidden_size)

    def lin(kw, kb):
        w = scale * jax.random.normal(kw, (hidden_size, hidden_size), jnp.float32)
        b = 0.02 * jax.random.normal(kb, (1, hidden_size), jnp.float32)
        return w, b

    wq, bq = lin(ks[0], ks[1])
    wk, bk = lin(ks[2], ks[3])
    wv, bv = lin(ks[4], ks[5])
    wo, bo = lin(ks[6], ks[7])
    gamma = 1.0 + 0.05 * jax.random.normal(ks[8], (1, hidden_size), jnp.float32)
    beta = 0.05 * jax.random.normal(ks[9], (1, hidden_size), jnp.float32)
    return dict(wq=wq, bq=bq, wk=wk, bk=bk, wv=wv, bv=bv, wo=wo, bo=bo,
                gamma=gamma, beta=beta)


# ----------------------------------------------------------------------------
# Pure-JAX f32 reference (matches the PyTorch module, including the K bias).
# ----------------------------------------------------------------------------
def _ref_bert_attention(hidden, mask, p, history=None, *, num_heads, ln_eps=1e-12):
    B, Sq, H = hidden.shape
    kv = hidden if history is None else history
    Sk = kv.shape[1]
    dH = H // num_heads

    q = hidden @ p["wq"] + p["bq"]
    k = kv @ p["wk"] + p["bk"]
    v = kv @ p["wv"] + p["bv"]

    def split(x, S):
        return x.reshape(B, S, num_heads, dH).transpose(0, 2, 1, 3)

    qh, kh, vh = split(q, Sq), split(k, Sk), split(v, Sk)
    scores = jnp.einsum('bhqd,bhkd->bhqk', qh, kh) / math.sqrt(dH)
    scores = scores + mask[:, None, None, :]
    scores = scores - jnp.max(scores, axis=-1, keepdims=True)
    e = jnp.exp(scores)
    probs = e / jnp.sum(e, axis=-1, keepdims=True)
    ctx = jnp.einsum('bhqk,bhkd->bhqd', probs, vh)
    ctx = ctx.transpose(0, 2, 1, 3).reshape(B, Sq, H)

    proj = ctx @ p["wo"] + p["bo"]
    y = proj + hidden
    mu = jnp.mean(y, axis=-1, keepdims=True)
    var = jnp.mean(jnp.square(y - mu), axis=-1, keepdims=True)
    out = (y - mu) * jax.lax.rsqrt(var + ln_eps) * p["gamma"] + p["beta"]
    return out, probs


# ----------------------------------------------------------------------------
if __name__ == "__main__":
    # BertAttention(hidden_size=128, num_attention_heads=4), batch=2, seq=8.
    B, S, HIDDEN, NUM_HEADS = 2, 8, 128, 4

    key = jax.random.PRNGKey(0)
    key, kx, khist = jax.random.split(key, 3)

    hidden_states = jax.random.normal(kx, (B, S, HIDDEN), jnp.float32)

    # Additive attention mask: 0 for valid positions, -10000 for padded ones.
    valid_lens = jnp.array([S, 5], jnp.int32)
    pos = jnp.arange(S)[None, :]
    attention_mask = jnp.where(pos < valid_lens[:, None], 0.0, -10000.0)
    attention_mask = attention_mask.astype(jnp.float32)

    params = make_bert_attention_params(key, HIDDEN)

    # --- self-attention path (history_states=None) ---------------------------
    out, probs = bert_attention_pallas(hidden_states, attention_mask, params,
                                       history_states=None,
                                       num_heads=NUM_HEADS)
    out = jax.block_until_ready(out)
    probs = jax.block_until_ready(probs)

    ref_out, ref_probs = _ref_bert_attention(hidden_states, attention_mask,
                                             params, None, num_heads=NUM_HEADS)
    # bf16 MXU inputs + approx reciprocal -> loose-but-meaningful tolerances.
    np.testing.assert_allclose(np.asarray(out), np.asarray(ref_out),
                               rtol=5e-2, atol=5e-2)
    np.testing.assert_allclose(np.asarray(probs), np.asarray(ref_probs),
                               rtol=2.5e-2, atol=2.5e-2)
    assert out.shape == (B, S, HIDDEN)
    assert probs.shape == (B, NUM_HEADS, S, S)

    # --- history_states path (K/V from a different, longer sequence) ---------
    S_HIST = 16
    history = jax.random.normal(khist, (B, S_HIST, HIDDEN), jnp.float32)
    hist_mask = jnp.zeros((B, S_HIST), jnp.float32)
    out_h, probs_h = bert_attention_pallas(hidden_states, hist_mask, params,
                                           history_states=history,
                                           num_heads=NUM_HEADS)
    out_h = jax.block_until_ready(out_h)
    ref_out_h, ref_probs_h = _ref_bert_attention(hidden_states, hist_mask,
                                                 params, history,
                                                 num_heads=NUM_HEADS)
    np.testing.assert_allclose(np.asarray(out_h), np.asarray(ref_out_h),
                               rtol=5e-2, atol=5e-2)
    np.testing.assert_allclose(np.asarray(probs_h), np.asarray(ref_probs_h),
                               rtol=2.5e-2, atol=2.5e-2)

    print("KERNEL_OK")
</pallas_src>

<mosaic_0001>
module attributes {stable_mosaic.version = 11 : i64} {
  func.func @_bert_attention_kernel(%arg0: i32, %arg1: memref<16x128xf32, #tpu.memory_space<vmem>>, %arg2: memref<16x128xf32, #tpu.memory_space<vmem>>, %arg3: memref<2x1x8xf32, #tpu.memory_space<vmem>>, %arg4: memref<128x128xbf16, #tpu.memory_space<vmem>>, %arg5: memref<1x128xf32, #tpu.memory_space<vmem>>, %arg6: memref<128x128xbf16, #tpu.memory_space<vmem>>, %arg7: memref<128x128xbf16, #tpu.memory_space<vmem>>, %arg8: memref<1x128xf32, #tpu.memory_space<vmem>>, %arg9: memref<4x32x128xbf16, #tpu.memory_space<vmem>>, %arg10: memref<1x128xf32, #tpu.memory_space<vmem>>, %arg11: memref<1x128xf32, #tpu.memory_space<vmem>>, %arg12: memref<1x128xf32, #tpu.memory_space<vmem>>, %arg13: memref<16x128xf32, #tpu.memory_space<vmem>>, %arg14: memref<8x8x8xf32, #tpu.memory_space<vmem>>) attributes {dimension_semantics = [#tpu.dimension_semantics<parallel>], iteration_bounds = array<i64: 1>, scalar_prefetch = 0 : i64, scratch_operands = 0 : i64, tpu.core_type = #tpu.core_type<tc>, window_params = [{transform_indices = @transform_0, window_bounds = array<i64: 16, 128>}, {transform_indices = @transform_1, window_bounds = array<i64: 16, 128>}, {transform_indices = @transform_2, window_bounds = array<i64: 2, 1, 8>}, {pipeline_mode = #tpu.pipeline_mode<synchronous>, transform_indices = @transform_3, window_bounds = array<i64: 128, 128>}, {pipeline_mode = #tpu.pipeline_mode<synchronous>, transform_indices = @transform_4, window_bounds = array<i64: 1, 128>}, {pipeline_mode = #tpu.pipeline_mode<synchronous>, transform_indices = @transform_5, window_bounds = array<i64: 128, 128>}, {pipeline_mode = #tpu.pipeline_mode<synchronous>, transform_indices = @transform_6, window_bounds = array<i64: 128, 128>}, {pipeline_mode = #tpu.pipeline_mode<synchronous>, transform_indices = @transform_7, window_bounds = array<i64: 1, 128>}, {pipeline_mode = #tpu.pipeline_mode<synchronous>, transform_indices = @transform_8, window_bounds = array<i64: 4, 32, 128>}, {pipeline_mode = #tpu.pipeline_mode<synchronous>, transform_indices = @transform_9, window_bounds = array<i64: 1, 128>}, {pipeline_mode = #tpu.pipeline_mode<synchronous>, transform_indices = @transform_10, window_bounds = array<i64: 1, 128>}, {pipeline_mode = #tpu.pipeline_mode<synchronous>, transform_indices = @transform_11, window_bounds = array<i64: 1, 128>}, {transform_indices = @transform_12, window_bounds = array<i64: 16, 128>}, {transform_indices = @transform_13, window_bounds = array<i64: 8, 8, 8>}]} {
    %c0 = arith.constant 0 : index
    %c0_0 = arith.constant 0 : index
    %0 = vector.load %arg1[%c0, %c0_0] : memref<16x128xf32, #tpu.memory_space<vmem>>, vector<16x128xf32>
    %1 = arith.truncf %0 : vector<16x128xf32> to vector<16x128xbf16>
    %c0_1 = arith.constant 0 : index
    %c0_2 = arith.constant 0 : index
    %2 = vector.load %arg2[%c0_1, %c0_2] : memref<16x128xf32, #tpu.memory_space<vmem>>, vector<16x128xf32>
    %3 = arith.truncf %2 : vector<16x128xf32> to vector<16x128xbf16>
    %c0_3 = arith.constant 0 : index
    %c0_4 = arith.constant 0 : index
    %4 = vector.load %arg4[%c0_3, %c0_4] : memref<128x128xbf16, #tpu.memory_space<vmem>>, vector<128x128xbf16>
    %cst = arith.constant dense<0.000000e+00> : vector<16x128xf32>
    %5 = tpu.matmul %1, %4, %cst {dimension_numbers = #tpu.dot_dimension_numbers<[1], [0], [0], [1], [0, 0, 1, 1], [], []>} : vector<16x128xbf16>, vector<128x128xbf16>, vector<16x128xf32> -> vector<16x128xf32>
    %c0_5 = arith.constant 0 : index
    %c0_6 = arith.constant 0 : index
    %6 = vector.load %arg5[%c0_5, %c0_6] : memref<1x128xf32, #tpu.memory_space<vmem>>, vector<1x128xf32>
    %7 = vector.broadcast %6 : vector<1x128xf32> to vector<16x128xf32>
    %8 = arith.addf %5, %7 : vector<16x128xf32>
    %c0_7 = arith.constant 0 : index
    %c0_8 = arith.constant 0 : index
    %9 = vector.load %arg6[%c0_7, %c0_8] : memref<128x128xbf16, #tpu.memory_space<vmem>>, vector<128x128xbf16>
    %cst_9 = arith.constant dense<0.000000e+00> : vector<16x128xf32>
    %10 = tpu.matmul %3, %9, %cst_9 {dimension_numbers = #tpu.dot_dimension_numbers<[1], [0], [0], [1], [0, 0, 1, 1], [], []>} : vector<16x128xbf16>, vector<128x128xbf16>, vector<16x128xf32> -> vector<16x128xf32>
    %c0_10 = arith.constant 0 : index
    %c0_11 = arith.constant 0 : index
    %11 = vector.load %arg7[%c0_10, %c0_11] : memref<128x128xbf16, #tpu.memory_space<vmem>>, vector<128x128xbf16>
    %cst_12 = arith.constant dense<0.000000e+00> : vector<16x128xf32>
    %12 = tpu.matmul %3, %11, %cst_12 {dimension_numbers = #tpu.dot_dimension_numbers<[1], [0], [0], [1], [0, 0, 1, 1], [], []>} : vector<16x128xbf16>, vector<128x128xbf16>, vector<16x128xf32> -> vector<16x128xf32>
    %c0_13 = arith.constant 0 : index
    %c0_14 = arith.constant 0 : index
    %13 = vector.load %arg8[%c0_13, %c0_14] : memref<1x128xf32, #tpu.memory_space<vmem>>, vector<1x128xf32>
    %14 = vector.broadcast %13 : vector<1x128xf32> to vector<16x128xf32>
    %15 = arith.addf %12, %14 : vector<16x128xf32>
    %cst_15 = arith.constant 0.176776692 : f32
    %16 = vector.broadcast %cst_15 : f32 to vector<16x128xf32>
    %17 = arith.mulf %8, %16 : vector<16x128xf32>
    %18 = arith.truncf %17 : vector<16x128xf32> to vector<16x128xbf16>
    %19 = arith.truncf %10 : vector<16x128xf32> to vector<16x128xbf16>
    %20 = arith.truncf %15 : vector<16x128xf32> to vector<16x128xbf16>
    %c0_16 = arith.constant 0 : index
    %c0_17 = arith.constant 0 : index
    %c0_18 = arith.constant 0 : index
    %21 = vector.load %arg3[%c0_16, %c0_17, %c0_18] : memref<2x1x8xf32, #tpu.memory_space<vmem>>, vector<2x1x8xf32>
    %22 = vector.extract_strided_slice %18 {offsets = [0, 0], sizes = [8, 128], strides = [1, 1]} : vector<16x128xbf16> to vector<8x128xbf16>
    %23 = vector.extract_strided_slice %19 {offsets = [0, 0], sizes = [8, 128], strides = [1, 1]} : vector<16x128xbf16> to vector<8x128xbf16>
    %24 = vector.extract_strided_slice %20 {offsets = [0, 0], sizes = [8, 128], strides = [1, 1]} : vector<16x128xbf16> to vector<8x128xbf16>
    %25 = vector.extract_strided_slice %0 {offsets = [0, 0], sizes = [8, 128], strides = [1, 1]} : vector<16x128xf32> to vector<8x128xf32>
    %26 = vector.extract_strided_slice %21 {offsets = [0, 0, 0], sizes = [1, 1, 8], strides = [1, 1, 1]} : vector<2x1x8xf32> to vector<1x1x8xf32>
    %27 = vector.shape_cast %26 : vector<1x1x8xf32> to vector<1x8xf32>
    %28 = vector.shape_cast %27 : vector<1x8xf32> to vector<1x8xf32>
    %29 = vector.broadcast %28 : vector<1x8xf32> to vector<8x8xf32>
    %cst_19 = arith.constant 0.000000e+00 : f32
    %30 = vector.broadcast %cst_19 : f32 to vector<8x128xf32>
    %31 = vector.extract_strided_slice %22 {offsets = [0, 0], sizes = [8, 32], strides = [1, 1]} : vector<8x128xbf16> to vector<8x32xbf16>
    %32 = vector.extract_strided_slice %23 {offsets = [0, 0], sizes = [8, 32], strides = [1, 1]} : vector<8x128xbf16> to vector<8x32xbf16>
    %33 = vector.extract_strided_slice %24 {offsets = [0, 0], sizes = [8, 32], strides = [1, 1]} : vector<8x128xbf16> to vector<8x32xbf16>
    %cst_20 = arith.constant dense<0.000000e+00> : vector<8x8xf32>
    %34 = tpu.matmul %31, %32, %cst_20 {dimension_numbers = #tpu.dot_dimension_numbers<[1], [1], [0], [0], [0, 0, 1, 0], [], []>} : vector<8x32xbf16>, vector<8x32xbf16>, vector<8x8xf32> -> vector<8x8xf32>
    %35 = arith.addf %34, %29 : vector<8x8xf32>
    %cst_21 = arith.constant dense<0xFF800000> : vector<8xf32>
    %36 = vector.multi_reduction <maximumf>, %35, %cst_21 [1] : vector<8x8xf32> to vector<8xf32>
    %37 = vector.shape_cast %36 : vector<8xf32> to vector<8x1xf32>
    %38 = vector.broadcast %37 : vector<8x1xf32> to vector<8x8xf32>
    %39 = arith.subf %35, %38 : vector<8x8xf32>
    %40 = math.exp %39 : vector<8x8xf32>
    %cst_22 = arith.constant dense<0.000000e+00> : vector<8xf32>
    %41 = vector.multi_reduction <add>, %40, %cst_22 [1] : vector<8x8xf32> to vector<8xf32>
    %42 = vector.shape_cast %41 : vector<8xf32> to vector<8x1xf32>
    %43 = tpu.reciprocal %42 {approx = true} : vector<8x1xf32> -> vector<8x1xf32>
    %44 = vector.broadcast %43 : vector<8x1xf32> to vector<8x8xf32>
    %45 = arith.mulf %40, %44 : vector<8x8xf32>
    %c0_23 = arith.constant 0 : index
    %c0_24 = arith.constant 0 : index
    %c0_25 = arith.constant 0 : index
    %46 = vector.load %arg14[%c0_23, %c0_24, %c0_25] : memref<8x8x8xf32, #tpu.memory_space<vmem>>, vector<1x8x8xf32>
    %47 = vector.shape_cast %46 : vector<1x8x8xf32> to vector<8x8xf32>
    %48 = vector.shape_cast %45 : vector<8x8xf32> to vector<1x8x8xf32>
    tpu.vector_store %arg14[%c0_23, %c0_24, %c0_25], %48 {strides = array<i32>} : memref<8x8x8xf32, #tpu.memory_space<vmem>>, vector<1x8x8xf32>,
    %49 = arith.truncf %45 : vector<8x8xf32> to vector<8x8xbf16>
    %cst_26 = arith.constant dense<0.000000e+00> : vector<8x32xf32>
    %50 = tpu.matmul %49, %33, %cst_26 {dimension_numbers = #tpu.dot_dimension_numbers<[1], [0], [0], [1], [0, 0, 1, 1], [], []>} : vector<8x8xbf16>, vector<8x32xbf16>, vector<8x32xf32> -> vector<8x32xf32>
    %51 = arith.truncf %50 : vector<8x32xf32> to vector<8x32xbf16>
    %c0_27 = arith.constant 0 : index
    %c0_28 = arith.constant 0 : index
    %c0_29 = arith.constant 0 : index
    %52 = vector.load %arg9[%c0_27, %c0_28, %c0_29] : memref<4x32x128xbf16, #tpu.memory_space<vmem>>, vector<1x32x128xbf16>
    %53 = vector.shape_cast %52 : vector<1x32x128xbf16> to vector<32x128xbf16>
    %cst_30 = arith.constant dense<0.000000e+00> : vector<8x128xf32>
    %54 = tpu.matmul %51, %53, %cst_30 {dimension_numbers = #tpu.dot_dimension_numbers<[1], [0], [0], [1], [0, 0, 1, 1], [], []>} : vector<8x32xbf16>, vector<32x128xbf16>, vector<8x128xf32> -> vector<8x128xf32>
    %55 = arith.addf %30, %54 : vector<8x128xf32>
    %56 = vector.extract_strided_slice %22 {offsets = [0, 32], sizes = [8, 32], strides = [1, 1]} : vector<8x128xbf16> to vector<8x32xbf16>
    %57 = vector.extract_strided_slice %23 {offsets = [0, 32], sizes = [8, 32], strides = [1, 1]} : vector<8x128xbf16> to vector<8x32xbf16>
    %58 = vector.extract_strided_slice %24 {offsets = [0, 32], sizes = [8, 32], strides = [1, 1]} : vector<8x128xbf16> to vector<8x32xbf16>
    %cst_31 = arith.constant dense<0.000000e+00> : vector<8x8xf32>
    %59 = tpu.matmul %56, %57, %cst_31 {dimension_numbers = #tpu.dot_dimension_numbers<[1], [1], [0], [0], [0, 0, 1, 0], [], []>} : vector<8x32xbf16>, vector<8x32xbf16>, vector<8x8xf32> -> vector<8x8xf32>
    %60 = arith.addf %59, %29 : vector<8x8xf32>
    %cst_32 = arith.constant dense<0xFF800000> : vector<8xf32>
    %61 = vector.multi_reduction <maximumf>, %60, %cst_32 [1] : vector<8x8xf32> to vector<8xf32>
    %62 = vector.shape_cast %61 : vector<8xf32> to vector<8x1xf32>
    %63 = vector.broadcast %62 : vector<8x1xf32> to vector<8x8xf32>
    %64 = arith.subf %60, %63 : vector<8x8xf32>
    %65 = math.exp %64 : vector<8x8xf32>
    %cst_33 = arith.constant dense<0.000000e+00> : vector<8xf32>
    %66 = vector.multi_reduction <add>, %65, %cst_33 [1] : vector<8x8xf32> to vector<8xf32>
    %67 = vector.shape_cast %66 : vector<8xf32> to vector<8x1xf32>
    %68 = tpu.reciprocal %67 {approx = true} : vector<8x1xf32> -> vector<8x1xf32>
    %69 = vector.broadcast %68 : vector<8x1xf32> to vector<8x8xf32>
    %70 = arith.mulf %65, %69 : vector<8x8xf32>
    %c1 = arith.constant 1 : index
    %c0_34 = arith.constant 0 : index
    %c0_35 = arith.constant 0 : index
    %71 = vector.load %arg14[%c1, %c0_34, %c0_35] : memref<8x8x8xf32, #tpu.memory_space<vmem>>, vector<1x8x8xf32>
    %72 = vector.shape_cast %71 : vector<1x8x8xf32> to vector<8x8xf32>
    %73 = vector.shape_cast %70 : vector<8x8xf32> to vector<1x8x8xf32>
    tpu.vector_store %arg14[%c1, %c0_34, %c0_35], %73 {strides = array<i32>} : memref<8x8x8xf32, #tpu.memory_space<vmem>>, vector<1x8x8xf32>,
    %74 = arith.truncf %70 : vector<8x8xf32> to vector<8x8xbf16>
    %cst_36 = arith.constant dense<0.000000e+00> : vector<8x32xf32>
    %75 = tpu.matmul %74, %58, %cst_36 {dimension_numbers = #tpu.dot_dimension_numbers<[1], [0], [0], [1], [0, 0, 1, 1], [], []>} : vector<8x8xbf16>, vector<8x32xbf16>, vector<8x32xf32> -> vector<8x32xf32>
    %76 = arith.truncf %75 : vector<8x32xf32> to vector<8x32xbf16>
    %c1_37 = arith.constant 1 : index
    %c0_38 = arith.constant 0 : index
    %c0_39 = arith.constant 0 : index
    %77 = vector.load %arg9[%c1_37, %c0_38, %c0_39] : memref<4x32x128xbf16, #tpu.memory_space<vmem>>, vector<1x32x128xbf16>
    %78 = vector.shape_cast %77 : vector<1x32x128xbf16> to vector<32x128xbf16>
    %cst_40 = arith.constant dense<0.000000e+00> : vector<8x128xf32>
    %79 = tpu.matmul %76, %78, %cst_40 {dimension_numbers = #tpu.dot_dimension_numbers<[1], [0], [0], [1], [0, 0, 1, 1], [], []>} : vector<8x32xbf16>, vector<32x128xbf16>, vector<8x128xf32> -> vector<8x128xf32>
    %80 = arith.addf %55, %79 : vector<8x128xf32>
    %81 = vector.extract_strided_slice %22 {offsets = [0, 64], sizes = [8, 32], strides = [1, 1]} : vector<8x128xbf16> to vector<8x32xbf16>
    %82 = vector.extract_strided_slice %23 {offsets = [0, 64], sizes = [8, 32], strides = [1, 1]} : vector<8x128xbf16> to vector<8x32xbf16>
    %83 = vector.extract_strided_slice %24 {offsets = [0, 64], sizes = [8, 32], strides = [1, 1]} : vector<8x128xbf16> to vector<8x32xbf16>
    %cst_41 = arith.constant dense<0.000000e+00> : vector<8x8xf32>
    %84 = tpu.matmul %81, %82, %cst_41 {dimension_numbers = #tpu.dot_dimension_numbers<[1], [1], [0], [0], [0, 0, 1, 0], [], []>} : vector<8x32xbf16>, vector<8x32xbf16>, vector<8x8xf32> -> vector<8x8xf32>
    %85 = arith.addf %84, %29 : vector<8x8xf32>
    %cst_42 = arith.constant dense<0xFF800000> : vector<8xf32>
    %86 = vector.multi_reduction <maximumf>, %85, %cst_42 [1] : vector<8x8xf32> to vector<8xf32>
    %87 = vector.shape_cast %86 : vector<8xf32> to vector<8x1xf32>
    %88 = vector.broadcast %87 : vector<8x1xf32> to vector<8x8xf32>
    %89 = arith.subf %85, %88 : vector<8x8xf32>
    %90 = math.exp %89 : vector<8x8xf32>
    %cst_43 = arith.constant dense<0.000000e+00> : vector<8xf32>
    %91 = vector.multi_reduction <add>, %90, %cst_43 [1] : vector<8x8xf32> to vector<8xf32>
    %92 = vector.shape_cast %91 : vector<8xf32> to vector<8x1xf32>
    %93 = tpu.reciprocal %92 {approx = true} : vector<8x1xf32> -> vector<8x1xf32>
    %94 = vector.broadcast %93 : vector<8x1xf32> to vector<8x8xf32>
    %95 = arith.mulf %90, %94 : vector<8x8xf32>
    %c2 = arith.constant 2 : index
    %c0_44 = arith.constant 0 : index
    %c0_45 = arith.constant 0 : index
    %96 = vector.load %arg14[%c2, %c0_44, %c0_45] : memref<8x8x8xf32, #tpu.memory_space<vmem>>, vector<1x8x8xf32>
    %97 = vector.shape_cast %96 : vector<1x8x8xf32> to vector<8x8xf32>
    %98 = vector.shape_cast %95 : vector<8x8xf32> to vector<1x8x8xf32>
    tpu.vector_store %arg14[%c2, %c0_44, %c0_45], %98 {strides = array<i32>} : memref<8x8x8xf32, #tpu.memory_space<vmem>>, vector<1x8x8xf32>,
    %99 = arith.truncf %95 : vector<8x8xf32> to vector<8x8xbf16>
    %cst_46 = arith.constant dense<0.000000e+00> : vector<8x32xf32>
    %100 = tpu.matmul %99, %83, %cst_46 {dimension_numbers = #tpu.dot_dimension_numbers<[1], [0], [0], [1], [0, 0, 1, 1], [], []>} : vector<8x8xbf16>, vector<8x32xbf16>, vector<8x32xf32> -> vector<8x32xf32>
    %101 = arith.truncf %100 : vector<8x32xf32> to vector<8x32xbf16>
    %c2_47 = arith.constant 2 : index
    %c0_48 = arith.constant 0 : index
    %c0_49 = arith.constant 0 : index
    %102 = vector.load %arg9[%c2_47, %c0_48, %c0_49] : memref<4x32x128xbf16, #tpu.memory_space<vmem>>, vector<1x32x128xbf16>
    %103 = vector.shape_cast %102 : vector<1x32x128xbf16> to vector<32x128xbf16>
    %cst_50 = arith.constant dense<0.000000e+00> : vector<8x128xf32>
    %104 = tpu.matmul %101, %103, %cst_50 {dimension_numbers = #tpu.dot_dimension_numbers<[1], [0], [0], [1], [0, 0, 1, 1], [], []>} : vector<8x32xbf16>, vector<32x128xbf16>, vector<8x128xf32> -> vector<8x128xf32>
    %105 = arith.addf %80, %104 : vector<8x128xf32>
    %106 = vector.extract_strided_slice %22 {offsets = [0, 96], sizes = [8, 32], strides = [1, 1]} : vector<8x128xbf16> to vector<8x32xbf16>
    %107 = vector.extract_strided_slice %23 {offsets = [0, 96], sizes = [8, 32], strides = [1, 1]} : vector<8x128xbf16> to vector<8x32xbf16>
    %108 = vector.extract_strided_slice %24 {offsets = [0, 96], sizes = [8, 32], strides = [1, 1]} : vector<8x128xbf16> to vector<8x32xbf16>
    %cst_51 = arith.constant dense<0.000000e+00> : vector<8x8xf32>
    %109 = tpu.matmul %106, %107, %cst_51 {dimension_numbers = #tpu.dot_dimension_numbers<[1], [1], [0], [0], [0, 0, 1, 0], [], []>} : vector<8x32xbf16>, vector<8x32xbf16>, vector<8x8xf32> -> vector<8x8xf32>
    %110 = arith.addf %109, %29 : vector<8x8xf32>
    %cst_52 = arith.constant dense<0xFF800000> : vector<8xf32>
    %111 = vector.multi_reduction <maximumf>, %110, %cst_52 [1] : vector<8x8xf32> to vector<8xf32>
    %112 = vector.shape_cast %111 : vector<8xf32> to vector<8x1xf32>
    %113 = vector.broadcast %112 : vector<8x1xf32> to vector<8x8xf32>
    %114 = arith.subf %110, %113 : vector<8x8xf32>
    %115 = math.exp %114 : vector<8x8xf32>
    %cst_53 = arith.constant dense<0.000000e+00> : vector<8xf32>
    %116 = vector.multi_reduction <add>, %115, %cst_53 [1] : vector<8x8xf32> to vector<8xf32>
    %117 = vector.shape_cast %116 : vector<8xf32> to vector<8x1xf32>
    %118 = tpu.reciprocal %117 {approx = true} : vector<8x1xf32> -> vector<8x1xf32>
    %119 = vector.broadcast %118 : vector<8x1xf32> to vector<8x8xf32>
    %120 = arith.mulf %115, %119 : vector<8x8xf32>
    %c3 = arith.constant 3 : index
    %c0_54 = arith.constant 0 : index
    %c0_55 = arith.constant 0 : index
    %121 = vector.load %arg14[%c3, %c0_54, %c0_55] : memref<8x8x8xf32, #tpu.memory_space<vmem>>, vector<1x8x8xf32>
    %122 = vector.shape_cast %121 : vector<1x8x8xf32> to vector<8x8xf32>
    %123 = vector.shape_cast %120 : vector<8x8xf32> to vector<1x8x8xf32>
    tpu.vector_store %arg14[%c3, %c0_54, %c0_55], %123 {strides = array<i32>} : memref<8x8x8xf32, #tpu.memory_space<vmem>>, vector<1x8x8xf32>,
    %124 = arith.truncf %120 : vector<8x8xf32> to vector<8x8xbf16>
    %cst_56 = arith.constant dense<0.000000e+00> : vector<8x32xf32>
    %125 = tpu.matmul %124, %108, %cst_56 {dimension_numbers = #tpu.dot_dimension_numbers<[1], [0], [0], [1], [0, 0, 1, 1], [], []>} : vector<8x8xbf16>, vector<8x32xbf16>, vector<8x32xf32> -> vector<8x32xf32>
    %126 = arith.truncf %125 : vector<8x32xf32> to vector<8x32xbf16>
    %c3_57 = arith.constant 3 : index
    %c0_58 = arith.constant 0 : index
    %c0_59 = arith.constant 0 : index
    %127 = vector.load %arg9[%c3_57, %c0_58, %c0_59] : memref<4x32x128xbf16, #tpu.memory_space<vmem>>, vector<1x32x128xbf16>
    %128 = vector.shape_cast %127 : vector<1x32x128xbf16> to vector<32x128xbf16>
    %cst_60 = arith.constant dense<0.000000e+00> : vector<8x128xf32>
    %129 = tpu.matmul %126, %128, %cst_60 {dimension_numbers = #tpu.dot_dimension_numbers<[1], [0], [0], [1], [0, 0, 1, 1], [], []>} : vector<8x32xbf16>, vector<32x128xbf16>, vector<8x128xf32> -> vector<8x128xf32>
    %130 = arith.addf %105, %129 : vector<8x128xf32>
    %c0_61 = arith.constant 0 : index
    %c0_62 = arith.constant 0 : index
    %131 = vector.load %arg10[%c0_61, %c0_62] : memref<1x128xf32, #tpu.memory_space<vmem>>, vector<1x128xf32>
    %132 = vector.broadcast %131 : vector<1x128xf32> to vector<8x128xf32>
    %133 = arith.addf %130, %132 : vector<8x128xf32>
    %134 = arith.addf %133, %25 : vector<8x128xf32>
    %cst_63 = arith.constant dense<0.000000e+00> : vector<8xf32>
    %135 = vector.multi_reduction <add>, %134, %cst_63 [1] : vector<8x128xf32> to vector<8xf32>
    %136 = vector.shape_cast %135 : vector<8xf32> to vector<8x1xf32>
    %cst_64 = arith.constant 1.280000e+02 : f32
    %137 = vector.broadcast %cst_64 : f32 to vector<8x1xf32>
    %138 = arith.divf %136, %137 : vector<8x1xf32>
    %139 = vector.broadcast %138 : vector<8x1xf32> to vector<8x128xf32>
    %140 = arith.subf %134, %139 : vector<8x128xf32>
    %141 = arith.mulf %140, %140 : vector<8x128xf32>
    %cst_65 = arith.constant dense<0.000000e+00> : vector<8xf32>
    %142 = vector.multi_reduction <add>, %141, %cst_65 [1] : vector<8x128xf32> to vector<8xf32>
    %143 = vector.shape_cast %142 : vector<8xf32> to vector<8x1xf32>
    %cst_66 = arith.constant 1.280000e+02 : f32
    %144 = vector.broadcast %cst_66 : f32 to vector<8x1xf32>
    %145 = arith.divf %143, %144 : vector<8x1xf32>
    %cst_67 = arith.constant 9.99999996E-13 : f32
    %146 = vector.broadcast %cst_67 : f32 to vector<8x1xf32>
    %147 = arith.addf %145, %146 : vector<8x1xf32>
    %148 = math.rsqrt %147 : vector<8x1xf32>
    %149 = vector.broadcast %148 : vector<8x1xf32> to vector<8x128xf32>
    %150 = arith.mulf %140, %149 : vector<8x128xf32>
    %c0_68 = arith.constant 0 : index
    %c0_69 = arith.constant 0 : index
    %151 = vector.load %arg11[%c0_68, %c0_69] : memref<1x128xf32, #tpu.memory_space<vmem>>, vector<1x128xf32>
    %152 = vector.broadcast %151 : vector<1x128xf32> to vector<8x128xf32>
    %153 = arith.mulf %150, %152 : vector<8x128xf32>
    %c0_70 = arith.constant 0 : index
    %c0_71 = arith.constant 0 : index
    %154 = vector.load %arg12[%c0_70, %c0_71] : memref<1x128xf32, #tpu.memory_space<vmem>>, vector<1x128xf32>
    %155 = vector.broadcast %154 : vector<1x128xf32> to vector<8x128xf32>
    %156 = arith.addf %153, %155 : vector<8x128xf32>
    %c0_72 = arith.constant 0 : index
    %c0_73 = arith.constant 0 : index
    %157 = vector.load %arg13[%c0_72, %c0_73] : memref<16x128xf32, #tpu.memory_space<vmem>>, vector<8x128xf32>
    tpu.vector_store %arg13[%c0_72, %c0_73], %156 {strides = array<i32>} : memref<16x128xf32, #tpu.memory_space<vmem>>, vector<8x128xf32>,
    %158 = vector.extract_strided_slice %18 {offsets = [8, 0], sizes = [8, 128], strides = [1, 1]} : vector<16x128xbf16> to vector<8x128xbf16>
    %159 = vector.extract_strided_slice %19 {offsets = [8, 0], sizes = [8, 128], strides = [1, 1]} : vector<16x128xbf16> to vector<8x128xbf16>
    %160 = vector.extract_strided_slice %20 {offsets = [8, 0], sizes = [8, 128], strides = [1, 1]} : vector<16x128xbf16> to vector<8x128xbf16>
    %161 = vector.extract_strided_slice %0 {offsets = [8, 0], sizes = [8, 128], strides = [1, 1]} : vector<16x128xf32> to vector<8x128xf32>
    %162 = vector.extract_strided_slice %21 {offsets = [1, 0, 0], sizes = [1, 1, 8], strides = [1, 1, 1]} : vector<2x1x8xf32> to vector<1x1x8xf32>
    %163 = vector.shape_cast %162 : vector<1x1x8xf32> to vector<1x8xf32>
    %164 = vector.shape_cast %163 : vector<1x8xf32> to vector<1x8xf32>
    %165 = vector.broadcast %164 : vector<1x8xf32> to vector<8x8xf32>
    %cst_74 = arith.constant 0.000000e+00 : f32
    %166 = vector.broadcast %cst_74 : f32 to vector<8x128xf32>
    %167 = vector.extract_strided_slice %158 {offsets = [0, 0], sizes = [8, 32], strides = [1, 1]} : vector<8x128xbf16> to vector<8x32xbf16>
    %168 = vector.extract_strided_slice %159 {offsets = [0, 0], sizes = [8, 32], strides = [1, 1]} : vector<8x128xbf16> to vector<8x32xbf16>
    %169 = vector.extract_strided_slice %160 {offsets = [0, 0], sizes = [8, 32], strides = [1, 1]} : vector<8x128xbf16> to vector<8x32xbf16>
    %cst_75 = arith.constant dense<0.000000e+00> : vector<8x8xf32>
    %170 = tpu.matmul %167, %168, %cst_75 {dimension_numbers = #tpu.dot_dimension_numbers<[1], [1], [0], [0], [0, 0, 1, 0], [], []>} : vector<8x32xbf16>, vector<8x32xbf16>, vector<8x8xf32> -> vector<8x8xf32>
    %171 = arith.addf %170, %165 : vector<8x8xf32>
    %cst_76 = arith.constant dense<0xFF800000> : vector<8xf32>
    %172 = vector.multi_reduction <maximumf>, %171, %cst_76 [1] : vector<8x8xf32> to vector<8xf32>
    %173 = vector.shape_cast %172 : vector<8xf32> to vector<8x1xf32>
    %174 = vector.broadcast %173 : vector<8x1xf32> to vector<8x8xf32>
    %175 = arith.subf %171, %174 : vector<8x8xf32>
    %176 = math.exp %175 : vector<8x8xf32>
    %cst_77 = arith.constant dense<0.000000e+00> : vector<8xf32>
    %177 = vector.multi_reduction <add>, %176, %cst_77 [1] : vector<8x8xf32> to vector<8xf32>
    %178 = vector.shape_cast %177 : vector<8xf32> to vector<8x1xf32>
    %179 = tpu.reciprocal %178 {approx = true} : vector<8x1xf32> -> vector<8x1xf32>
    %180 = vector.broadcast %179 : vector<8x1xf32> to vector<8x8xf32>
    %181 = arith.mulf %176, %180 : vector<8x8xf32>
    %c4 = arith.constant 4 : index
    %c0_78 = arith.constant 0 : index
    %c0_79 = arith.constant 0 : index
    %182 = vector.load %arg14[%c4, %c0_78, %c0_79] : memref<8x8x8xf32, #tpu.memory_space<vmem>>, vector<1x8x8xf32>
    %183 = vector.shape_cast %182 : vector<1x8x8xf32> to vector<8x8xf32>
    %184 = vector.shape_cast %181 : vector<8x8xf32> to vector<1x8x8xf32>
    tpu.vector_store %arg14[%c4, %c0_78, %c0_79], %184 {strides = array<i32>} : memref<8x8x8xf32, #tpu.memory_space<vmem>>, vector<1x8x8xf32>,
    %185 = arith.truncf %181 : vector<8x8xf32> to vector<8x8xbf16>
    %cst_80 = arith.constant dense<0.000000e+00> : vector<8x32xf32>
    %186 = tpu.matmul %185, %169, %cst_80 {dimension_numbers = #tpu.dot_dimension_numbers<[1], [0], [0], [1], [0, 0, 1, 1], [], []>} : vector<8x8xbf16>, vector<8x32xbf16>, vector<8x32xf32> -> vector<8x32xf32>
    %187 = arith.truncf %186 : vector<8x32xf32> to vector<8x32xbf16>
    %c0_81 = arith.constant 0 : index
    %c0_82 = arith.constant 0 : index
    %c0_83 = arith.constant 0 : index
    %188 = vector.load %arg9[%c0_81, %c0_82, %c0_83] : memref<4x32x128xbf16, #tpu.memory_space<vmem>>, vector<1x32x128xbf16>
    %189 = vector.shape_cast %188 : vector<1x32x128xbf16> to vector<32x128xbf16>
    %cst_84 = arith.constant dense<0.000000e+00> : vector<8x128xf32>
    %190 = tpu.matmul %187, %189, %cst_84 {dimension_numbers = #tpu.dot_dimension_numbers<[1], [0], [0], [1], [0, 0, 1, 1], [], []>} : vector<8x32xbf16>, vector<32x128xbf16>, vector<8x128xf32> -> vector<8x128xf32>
    %191 = arith.addf %166, %190 : vector<8x128xf32>
    %192 = vector.extract_strided_slice %158 {offsets = [0, 32], sizes = [8, 32], strides = [1, 1]} : vector<8x128xbf16> to vector<8x32xbf16>
    %193 = vector.extract_strided_slice %159 {offsets = [0, 32], sizes = [8, 32], strides = [1, 1]} : vector<8x128xbf16> to vector<8x32xbf16>
    %194 = vector.extract_strided_slice %160 {offsets = [0, 32], sizes = [8, 32], strides = [1, 1]} : vector<8x128xbf16> to vector<8x32xbf16>
    %cst_85 = arith.constant dense<0.000000e+00> : vector<8x8xf32>
    %195 = tpu.matmul %192, %193, %cst_85 {dimension_numbers = #tpu.dot_dimension_numbers<[1], [1], [0], [0], [0, 0, 1, 0], [], []>} : vector<8x32xbf16>, vector<8x32xbf16>, vector<8x8xf32> -> vector<8x8xf32>
    %196 = arith.addf %195, %165 : vector<8x8xf32>
    %cst_86 = arith.constant dense<0xFF800000> : vector<8xf32>
    %197 = vector.multi_reduction <maximumf>, %196, %cst_86 [1] : vector<8x8xf32> to vector<8xf32>
    %198 = vector.shape_cast %197 : vector<8xf32> to vector<8x1xf32>
    %199 = vector.broadcast %198 : vector<8x1xf32> to vector<8x8xf32>
    %200 = arith.subf %196, %199 : vector<8x8xf32>
    %201 = math.exp %200 : vector<8x8xf32>
    %cst_87 = arith.constant dense<0.000000e+00> : vector<8xf32>
    %202 = vector.multi_reduction <add>, %201, %cst_87 [1] : vector<8x8xf32> to vector<8xf32>
    %203 = vector.shape_cast %202 : vector<8xf32> to vector<8x1xf32>
    %204 = tpu.reciprocal %203 {approx = true} : vector<8x1xf32> -> vector<8x1xf32>
    %205 = vector.broadcast %204 : vector<8x1xf32> to vector<8x8xf32>
    %206 = arith.mulf %201, %205 : vector<8x8xf32>
    %c5 = arith.constant 5 : index
    %c0_88 = arith.constant 0 : index
    %c0_89 = arith.constant 0 : index
    %207 = vector.load %arg14[%c5, %c0_88, %c0_89] : memref<8x8x8xf32, #tpu.memory_space<vmem>>, vector<1x8x8xf32>
    %208 = vector.shape_cast %207 : vector<1x8x8xf32> to vector<8x8xf32>
    %209 = vector.shape_cast %206 : vector<8x8xf32> to vector<1x8x8xf32>
    tpu.vector_store %arg14[%c5, %c0_88, %c0_89], %209 {strides = array<i32>} : memref<8x8x8xf32, #tpu.memory_space<vmem>>, vector<1x8x8xf32>,
    %210 = arith.truncf %206 : vector<8x8xf32> to vector<8x8xbf16>
    %cst_90 = arith.constant dense<0.000000e+00> : vector<8x32xf32>
    %211 = tpu.matmul %210, %194, %cst_90 {dimension_numbers = #tpu.dot_dimension_numbers<[1], [0], [0], [1], [0, 0, 1, 1], [], []>} : vector<8x8xbf16>, vector<8x32xbf16>, vector<8x32xf32> -> vector<8x32xf32>
    %212 = arith.truncf %211 : vector<8x32xf32> to vector<8x32xbf16>
    %c1_91 = arith.constant 1 : index
    %c0_92 = arith.constant 0 : index
    %c0_93 = arith.constant 0 : index
    %213 = vector.load %arg9[%c1_91, %c0_92, %c0_93] : memref<4x32x128xbf16, #tpu.memory_space<vmem>>, vector<1x32x128xbf16>
    %214 = vector.shape_cast %213 : vector<1x32x128xbf16> to vector<32x128xbf16>
    %cst_94 = arith.constant dense<0.000000e+00> : vector<8x128xf32>
    %215 = tpu.matmul %212, %214, %cst_94 {dimension_numbers = #tpu.dot_dimension_numbers<[1], [0], [0], [1], [0, 0, 1, 1], [], []>} : vector<8x32xbf16>, vector<32x128xbf16>, vector<8x128xf32> -> vector<8x128xf32>
    %216 = arith.addf %191, %215 : vector<8x128xf32>
    %217 = vector.extract_strided_slice %158 {offsets = [0, 64], sizes = [8, 32], strides = [1, 1]} : vector<8x128xbf16> to vector<8x32xbf16>
    %218 = vector.extract_strided_slice %159 {offsets = [0, 64], sizes = [8, 32], strides = [1, 1]} : vector<8x128xbf16> to vector<8x32xbf16>
    %219 = vector.extract_strided_slice %160 {offsets = [0, 64], sizes = [8, 32], strides = [1, 1]} : vector<8x128xbf16> to vector<8x32xbf16>
    %cst_95 = arith.constant dense<0.000000e+00> : vector<8x8xf32>
    %220 = tpu.matmul %217, %218, %cst_95 {dimension_numbers = #tpu.dot_dimension_numbers<[1], [1], [0], [0], [0, 0, 1, 0], [], []>} : vector<8x32xbf16>, vector<8x32xbf16>, vector<8x8xf32> -> vector<8x8xf32>
    %221 = arith.addf %220, %165 : vector<8x8xf32>
    %cst_96 = arith.constant dense<0xFF800000> : vector<8xf32>
    %222 = vector.multi_reduction <maximumf>, %221, %cst_96 [1] : vector<8x8xf32> to vector<8xf32>
    %223 = vector.shape_cast %222 : vector<8xf32> to vector<8x1xf32>
    %224 = vector.broadcast %223 : vector<8x1xf32> to vector<8x8xf32>
    %225 = arith.subf %221, %224 : vector<8x8xf32>
    %226 = math.exp %225 : vector<8x8xf32>
    %cst_97 = arith.constant dense<0.000000e+00> : vector<8xf32>
    %227 = vector.multi_reduction <add>, %226, %cst_97 [1] : vector<8x8xf32> to vector<8xf32>
    %228 = vector.shape_cast %227 : vector<8xf32> to vector<8x1xf32>
    %229 = tpu.reciprocal %228 {approx = true} : vector<8x1xf32> -> vector<8x1xf32>
    %230 = vector.broadcast %229 : vector<8x1xf32> to vector<8x8xf32>
    %231 = arith.mulf %226, %230 : vector<8x8xf32>
    %c6 = arith.constant 6 : index
    %c0_98 = arith.constant 0 : index
    %c0_99 = arith.constant 0 : index
    %232 = vector.load %arg14[%c6, %c0_98, %c0_99] : memref<8x8x8xf32, #tpu.memory_space<vmem>>, vector<1x8x8xf32>
    %233 = vector.shape_cast %232 : vector<1x8x8xf32> to vector<8x8xf32>
    %234 = vector.shape_cast %231 : vector<8x8xf32> to vector<1x8x8xf32>
    tpu.vector_store %arg14[%c6, %c0_98, %c0_99], %234 {strides = array<i32>} : memref<8x8x8xf32, #tpu.memory_space<vmem>>, vector<1x8x8xf32>,
    %235 = arith.truncf %231 : vector<8x8xf32> to vector<8x8xbf16>
    %cst_100 = arith.constant dense<0.000000e+00> : vector<8x32xf32>
    %236 = tpu.matmul %235, %219, %cst_100 {dimension_numbers = #tpu.dot_dimension_numbers<[1], [0], [0], [1], [0, 0, 1, 1], [], []>} : vector<8x8xbf16>, vector<8x32xbf16>, vector<8x32xf32> -> vector<8x32xf32>
    %237 = arith.truncf %236 : vector<8x32xf32> to vector<8x32xbf16>
    %c2_101 = arith.constant 2 : index
    %c0_102 = arith.constant 0 : index
    %c0_103 = arith.constant 0 : index
    %238 = vector.load %arg9[%c2_101, %c0_102, %c0_103] : memref<4x32x128xbf16, #tpu.memory_space<vmem>>, vector<1x32x128xbf16>
    %239 = vector.shape_cast %238 : vector<1x32x128xbf16> to vector<32x128xbf16>
    %cst_104 = arith.constant dense<0.000000e+00> : vector<8x128xf32>
    %240 = tpu.matmul %237, %239, %cst_104 {dimension_numbers = #tpu.dot_dimension_numbers<[1], [0], [0], [1], [0, 0, 1, 1], [], []>} : vector<8x32xbf16>, vector<32x128xbf16>, vector<8x128xf32> -> vector<8x128xf32>
    %241 = arith.addf %216, %240 : vector<8x128xf32>
    %242 = vector.extract_strided_slice %158 {offsets = [0, 96], sizes = [8, 32], strides = [1, 1]} : vector<8x128xbf16> to vector<8x32xbf16>
    %243 = vector.extract_strided_slice %159 {offsets = [0, 96], sizes = [8, 32], strides = [1, 1]} : vector<8x128xbf16> to vector<8x32xbf16>
    %244 = vector.extract_strided_slice %160 {offsets = [0, 96], sizes = [8, 32], strides = [1, 1]} : vector<8x128xbf16> to vector<8x32xbf16>
    %cst_105 = arith.constant dense<0.000000e+00> : vector<8x8xf32>
    %245 = tpu.matmul %242, %243, %cst_105 {dimension_numbers = #tpu.dot_dimension_numbers<[1], [1], [0], [0], [0, 0, 1, 0], [], []>} : vector<8x32xbf16>, vector<8x32xbf16>, vector<8x8xf32> -> vector<8x8xf32>
    %246 = arith.addf %245, %165 : vector<8x8xf32>
    %cst_106 = arith.constant dense<0xFF800000> : vector<8xf32>
    %247 = vector.multi_reduction <maximumf>, %246, %cst_106 [1] : vector<8x8xf32> to vector<8xf32>
    %248 = vector.shape_cast %247 : vector<8xf32> to vector<8x1xf32>
    %249 = vector.broadcast %248 : vector<8x1xf32> to vector<8x8xf32>
    %250 = arith.subf %246, %249 : vector<8x8xf32>
    %251 = math.exp %250 : vector<8x8xf32>
    %cst_107 = arith.constant dense<0.000000e+00> : vector<8xf32>
    %252 = vector.multi_reduction <add>, %251, %cst_107 [1] : vector<8x8xf32> to vector<8xf32>
    %253 = vector.shape_cast %252 : vector<8xf32> to vector<8x1xf32>
    %254 = tpu.reciprocal %253 {approx = true} : vector<8x1xf32> -> vector<8x1xf32>
    %255 = vector.broadcast %254 : vector<8x1xf32> to vector<8x8xf32>
    %256 = arith.mulf %251, %255 : vector<8x8xf32>
    %c7 = arith.constant 7 : index
    %c0_108 = arith.constant 0 : index
    %c0_109 = arith.constant 0 : index
    %257 = vector.load %arg14[%c7, %c0_108, %c0_109] : memref<8x8x8xf32, #tpu.memory_space<vmem>>, vector<1x8x8xf32>
    %258 = vector.shape_cast %257 : vector<1x8x8xf32> to vector<8x8xf32>
    %259 = vector.shape_cast %256 : vector<8x8xf32> to vector<1x8x8xf32>
    tpu.vector_store %arg14[%c7, %c0_108, %c0_109], %259 {strides = array<i32>} : memref<8x8x8xf32, #tpu.memory_space<vmem>>, vector<1x8x8xf32>,
    %260 = arith.truncf %256 : vector<8x8xf32> to vector<8x8xbf16>
    %cst_110 = arith.constant dense<0.000000e+00> : vector<8x32xf32>
    %261 = tpu.matmul %260, %244, %cst_110 {dimension_numbers = #tpu.dot_dimension_numbers<[1], [0], [0], [1], [0, 0, 1, 1], [], []>} : vector<8x8xbf16>, vector<8x32xbf16>, vector<8x32xf32> -> vector<8x32xf32>
    %262 = arith.truncf %261 : vector<8x32xf32> to vector<8x32xbf16>
    %c3_111 = arith.constant 3 : index
    %c0_112 = arith.constant 0 : index
    %c0_113 = arith.constant 0 : index
    %263 = vector.load %arg9[%c3_111, %c0_112, %c0_113] : memref<4x32x128xbf16, #tpu.memory_space<vmem>>, vector<1x32x128xbf16>
    %264 = vector.shape_cast %263 : vector<1x32x128xbf16> to vector<32x128xbf16>
    %cst_114 = arith.constant dense<0.000000e+00> : vector<8x128xf32>
    %265 = tpu.matmul %262, %264, %cst_114 {dimension_numbers = #tpu.dot_dimension_numbers<[1], [0], [0], [1], [0, 0, 1, 1], [], []>} : vector<8x32xbf16>, vector<32x128xbf16>, vector<8x128xf32> -> vector<8x128xf32>
    %266 = arith.addf %241, %265 : vector<8x128xf32>
    %c0_115 = arith.constant 0 : index
    %c0_116 = arith.constant 0 : index
    %267 = vector.load %arg10[%c0_115, %c0_116] : memref<1x128xf32, #tpu.memory_space<vmem>>, vector<1x128xf32>
    %268 = vector.broadcast %267 : vector<1x128xf32> to vector<8x128xf32>
    %269 = arith.addf %266, %268 : vector<8x128xf32>
    %270 = arith.addf %269, %161 : vector<8x128xf32>
    %cst_117 = arith.constant dense<0.000000e+00> : vector<8xf32>
    %271 = vector.multi_reduction <add>, %270, %cst_117 [1] : vector<8x128xf32> to vector<8xf32>
    %272 = vector.shape_cast %271 : vector<8xf32> to vector<8x1xf32>
    %cst_118 = arith.constant 1.280000e+02 : f32
    %273 = vector.broadcast %cst_118 : f32 to vector<8x1xf32>
    %274 = arith.divf %272, %273 : vector<8x1xf32>
    %275 = vector.broadcast %274 : vector<8x1xf32> to vector<8x128xf32>
    %276 = arith.subf %270, %275 : vector<8x128xf32>
    %277 = arith.mulf %276, %276 : vector<8x128xf32>
    %cst_119 = arith.constant dense<0.000000e+00> : vector<8xf32>
    %278 = vector.multi_reduction <add>, %277, %cst_119 [1] : vector<8x128xf32> to vector<8xf32>
    %279 = vector.shape_cast %278 : vector<8xf32> to vector<8x1xf32>
    %cst_120 = arith.constant 1.280000e+02 : f32
    %280 = vector.broadcast %cst_120 : f32 to vector<8x1xf32>
    %281 = arith.divf %279, %280 : vector<8x1xf32>
    %cst_121 = arith.constant 9.99999996E-13 : f32
    %282 = vector.broadcast %cst_121 : f32 to vector<8x1xf32>
    %283 = arith.addf %281, %282 : vector<8x1xf32>
    %284 = math.rsqrt %283 : vector<8x1xf32>
    %285 = vector.broadcast %284 : vector<8x1xf32> to vector<8x128xf32>
    %286 = arith.mulf %276, %285 : vector<8x128xf32>
    %c0_122 = arith.constant 0 : index
    %c0_123 = arith.constant 0 : index
    %287 = vector.load %arg11[%c0_122, %c0_123] : memref<1x128xf32, #tpu.memory_space<vmem>>, vector<1x128xf32>
    %288 = vector.broadcast %287 : vector<1x128xf32> to vector<8x128xf32>
    %289 = arith.mulf %286, %288 : vector<8x128xf32>
    %c0_124 = arith.constant 0 : index
    %c0_125 = arith.constant 0 : index
    %290 = vector.load %arg12[%c0_124, %c0_125] : memref<1x128xf32, #tpu.memory_space<vmem>>, vector<1x128xf32>
    %291 = vector.broadcast %290 : vector<1x128xf32> to vector<8x128xf32>
    %292 = arith.addf %289, %291 : vector<8x128xf32>
    %c8 = arith.constant 8 : index
    %c0_126 = arith.constant 0 : index
    %293 = vector.load %arg13[%c8, %c0_126] : memref<16x128xf32, #tpu.memory_space<vmem>>, vector<8x128xf32>
    tpu.vector_store %arg13[%c8, %c0_126], %292 {strides = array<i32>} : memref<16x128xf32, #tpu.memory_space<vmem>>, vector<8x128xf32>,
    return
  }
  func.func @transform_0(%arg0: i32) -> (i32, i32) {
    %c0_i32 = arith.constant 0 : i32
    %c0_i32_0 = arith.constant 0 : i32
    return %arg0, %c0_i32 : i32, i32
  }
  func.func @transform_1(%arg0: i32) -> (i32, i32) {
    %c0_i32 = arith.constant 0 : i32
    %c0_i32_0 = arith.constant 0 : i32
    return %arg0, %c0_i32 : i32, i32
  }
  func.func @transform_2(%arg0: i32) -> (i32, i32, i32) {
    %c0_i32 = arith.constant 0 : i32
    %c0_i32_0 = arith.constant 0 : i32
    %c0_i32_1 = arith.constant 0 : i32
    return %arg0, %c0_i32, %c0_i32_0 : i32, i32, i32
  }
  func.func @transform_3(%arg0: i32) -> (i32, i32) {
    %c0_i32 = arith.constant 0 : i32
    %c0_i32_0 = arith.constant 0 : i32
    %c0_i32_1 = arith.constant 0 : i32
    return %c0_i32, %c0_i32_0 : i32, i32
  }
  func.func @transform_4(%arg0: i32) -> (i32, i32) {
    %c0_i32 = arith.constant 0 : i32
    %c0_i32_0 = arith.constant 0 : i32
    %c0_i32_1 = arith.constant 0 : i32
    return %c0_i32, %c0_i32_0 : i32, i32
  }
  func.func @transform_5(%arg0: i32) -> (i32, i32) {
    %c0_i32 = arith.constant 0 : i32
    %c0_i32_0 = arith.constant 0 : i32
    %c0_i32_1 = arith.constant 0 : i32
    return %c0_i32, %c0_i32_0 : i32, i32
  }
  func.func @transform_6(%arg0: i32) -> (i32, i32) {
    %c0_i32 = arith.constant 0 : i32
    %c0_i32_0 = arith.constant 0 : i32
    %c0_i32_1 = arith.constant 0 : i32
    return %c0_i32, %c0_i32_0 : i32, i32
  }
  func.func @transform_7(%arg0: i32) -> (i32, i32) {
    %c0_i32 = arith.constant 0 : i32
    %c0_i32_0 = arith.constant 0 : i32
    %c0_i32_1 = arith.constant 0 : i32
    return %c0_i32, %c0_i32_0 : i32, i32
  }
  func.func @transform_8(%arg0: i32) -> (i32, i32, i32) {
    %c0_i32 = arith.constant 0 : i32
    %c0_i32_0 = arith.constant 0 : i32
    %c0_i32_1 = arith.constant 0 : i32
    %c0_i32_2 = arith.constant 0 : i32
    return %c0_i32, %c0_i32_0, %c0_i32_1 : i32, i32, i32
  }
  func.func @transform_9(%arg0: i32) -> (i32, i32) {
    %c0_i32 = arith.constant 0 : i32
    %c0_i32_0 = arith.constant 0 : i32
    %c0_i32_1 = arith.constant 0 : i32
    return %c0_i32, %c0_i32_0 : i32, i32
  }
  func.func @transform_10(%arg0: i32) -> (i32, i32) {
    %c0_i32 = arith.constant 0 : i32
    %c0_i32_0 = arith.constant 0 : i32
    %c0_i32_1 = arith.constant 0 : i32
    return %c0_i32, %c0_i32_0 : i32, i32
  }
  func.func @transform_11(%arg0: i32) -> (i32, i32) {
    %c0_i32 = arith.constant 0 : i32
    %c0_i32_0 = arith.constant 0 : i32
    %c0_i32_1 = arith.constant 0 : i32
    return %c0_i32, %c0_i32_0 : i32, i32
  }
  func.func @transform_12(%arg0: i32) -> (i32, i32) {
    %c0_i32 = arith.constant 0 : i32
    %c0_i32_0 = arith.constant 0 : i32
    return %arg0, %c0_i32 : i32, i32
  }
  func.func @transform_13(%arg0: i32) -> (i32, i32, i32) {
    %c0_i32 = arith.constant 0 : i32
    %c0_i32_0 = arith.constant 0 : i32
    %c0_i32_1 = arith.constant 0 : i32
    return %arg0, %c0_i32, %c0_i32_0 : i32, i32, i32
  }
}

</mosaic_0001>

<llo_original>
// kernel: tpu_custom_call.1
$region0: #{tpu_custom_call.1}
  #allocation0 [shape = 'u32[]', space=smem, size = 0x4, offset = 0x4, fixed_abs, tag = 'smem constant byte address 0x4 - core index']
  #allocation1 [shape = 'u32[72,128]{1,0:T(1,128)}', space=vmem, size = 0x9000, scoped, tag = 'internal scratch']
  %s0 = inlined_call_operand.hbm [shape: f32[16,128], index: 0, kind: input, shape index: {}]
  %s1 = inlined_call_operand.hbm [shape: f32[16,128], index: 1, kind: input, shape index: {}]
  %s2 = inlined_call_operand.hbm [shape: f32[2,1,8], index: 2, kind: input, shape index: {}]
  %s3 = inlined_call_operand.hbm [shape: bf16[128,128], index: 3, kind: input, shape index: {}]
  %s4 = inlined_call_operand.vmem [shape: f32[1,128], index: 4, kind: input, shape index: {}]
  %s5 = inlined_call_operand.hbm [shape: bf16[128,128], index: 5, kind: input, shape index: {}]
  %s6 = inlined_call_operand.hbm [shape: bf16[128,128], index: 6, kind: input, shape index: {}]
  %s7 = inlined_call_operand.vmem [shape: f32[1,128], index: 7, kind: input, shape index: {}]
  %s8 = inlined_call_operand.hbm [shape: bf16[4,32,128], index: 8, kind: input, shape index: {}]
  %s9 = inlined_call_operand.vmem [shape: f32[1,128], index: 9, kind: input, shape index: {}]
  %s10 = inlined_call_operand.vmem [shape: f32[1,128], index: 10, kind: input, shape index: {}]
  %s11 = inlined_call_operand.vmem [shape: f32[1,128], index: 11, kind: input, shape index: {}]
  %s12 = inlined_call_operand.hbm [shape: f32[16,128], index: 12, kind: output, shape index: {0}]
  %s13 = inlined_call_operand.hbm [shape: f32[8,8,8], index: 13, kind: output, shape index: {1}]
  %14 = xla_tuple %s12, %s13
  %s15 = sld [smem:[#allocation0]]
  $region94: #{tpu_custom_call.1} parent=0
    _
  %s17 = ssub.s32 1, %s15
  %s18 = scalar_select 0, %s17, %s15
  $region1: #{tpu_custom_call.1} parent=0
    #allocation2 [shape = 'u8[8192]{0}', space=vmem, size = 0x2000, scoped, tag = 'input window, operand 0, single buffered']
    #allocation3 [shape = 's32[1]{0}', space=sflag, size = 0x4, scoped, tag = 'scoped memory for tpu_custom_call.1']
    #allocation4 [shape = 's32[1]{0}', space=sflag, size = 0x4, scoped, tag = 'scoped memory for tpu_custom_call.1']
    #allocation5 [shape = 'u8[8192]{0}', space=vmem, size = 0x2000, scoped, tag = 'input window, operand 1, single buffered']
    #allocation6 [shape = 's32[1]{0}', space=sflag, size = 0x4, scoped, tag = 'scoped memory for tpu_custom_call.1']
    #allocation7 [shape = 'u8[1024]{0}', space=vmem, size = 0x400, scoped, tag = 'input window, operand 2, single buffered']
    #allocation8 [shape = 'u8[32768]{0}', space=vmem, size = 0x8000, scoped, tag = 'input window, operand 3, single buffered']
    #allocation9 [shape = 's32[1]{0}', space=sflag, size = 0x4, scoped, tag = 'scoped memory for tpu_custom_call.1']
    #allocation10 [shape = 'u8[32768]{0}', space=vmem, size = 0x8000, scoped, tag = 'input window, operand 5, single buffered']
    #allocation11 [shape = 'u8[32768]{0}', space=vmem, size = 0x8000, scoped, tag = 'input window, operand 6, single buffered']
    #allocation12 [shape = 's32[1]{0}', space=sflag, size = 0x4, scoped, tag = 'scoped memory for tpu_custom_call.1']
    #allocation13 [shape = 'u8[32768]{0}', space=vmem, size = 0x8000, scoped, tag = 'input window, operand 8, single buffered']
    #allocation14 [shape = 'u8[8192]{0}', space=vmem, size = 0x2000, scoped, tag = 'output window, operand 0, single buffered']
    #allocation15 [shape = 'u8[32768]{0}', space=vmem, size = 0x8000, scoped, tag = 'output window, operand 1, single buffered']
    #allocation16 [shape = 's32[1]{0}', space=sflag, size = 0x4, scoped, tag = 'scoped memory for tpu_custom_call.1']
    %19 = vsyncpa [#allocation3], 0
    %20 = vsyncpa [#allocation6], 0
    %21 = vsyncpa [#allocation9], 0
    %22 = vsyncpa [#allocation12], 0
    %23 = vsyncpa [#allocation4], 0
    %24 = vsyncpa [#allocation16], 0
    // Predicated region
    $region2: #{tpu_custom_call.1} parent=1 // pred_check
      _
    $region3: #{tpu_custom_call.1} parent=1 // pred_check_branch
      %26 = sbr.rel (0) target = $region5
    $region4: #{tpu_custom_call.1} parent=1 // pred_region
      %28 = vsyncadd [#allocation3], 0
      %s29 = sshll.u32 %s0, 4
      %s30 = int_to_ptr.hbm [resolvable:$true] %s29
      %s31 = sshll.u32 [#allocation2], 4
      %s32 = int_to_ptr.vmem [resolvable:$true] %s31
      %37 = dma.hbm_to_vmem [thread:$0]  %s30, 256, %s32, [#allocation3], 128, 128, 8
    $region5: #{tpu_custom_call.1} parent=1 // pred_fallthru
      _
    // Predicated region
    $region6: #{tpu_custom_call.1} parent=1 // pred_check
      _
    $region7: #{tpu_custom_call.1} parent=1 // pred_check_branch
      %39 = sbr.rel (0) target = $region9
    $region8: #{tpu_custom_call.1} parent=1 // pred_region
      %41 = vsyncadd [#allocation6], 0
      %s42 = sshll.u32 %s1, 4
      %s43 = int_to_ptr.hbm [resolvable:$true] %s42
      %s44 = sshll.u32 [#allocation5], 4
      %s45 = int_to_ptr.vmem [resolvable:$true] %s44
      %50 = dma.hbm_to_vmem [thread:$0]  %s43, 256, %s45, [#allocation6], 128, 128, 8
    $region9: #{tpu_custom_call.1} parent=1 // pred_fallthru
      _
    // Predicated region
    $region10: #{tpu_custom_call.1} parent=1 // pred_check
      _
    $region11: #{tpu_custom_call.1} parent=1 // pred_check_branch
      %52 = sbr.rel (0) target = $region13
    $region12: #{tpu_custom_call.1} parent=1 // pred_region
      %54 = vsyncadd [#allocation6], 0
      %s55 = sshll.u32 %s2, 4
      %s56 = int_to_ptr.hbm [resolvable:$true] %s55
      %s57 = sshll.u32 [#allocation7], 4
      %s58 = int_to_ptr.vmem [resolvable:$true] %s57
      %63 = dma.hbm_to_vmem [thread:$0]  %s56, 32, %s58, [#allocation6], 16, 16, 1
    $region13: #{tpu_custom_call.1} parent=1 // pred_fallthru
      _
    // Predicated region
    $region14: #{tpu_custom_call.1} parent=1 // pred_check
      _
    $region15: #{tpu_custom_call.1} parent=1 // pred_check_branch
      %65 = sbr.rel (0) target = $region17
    $region16: #{tpu_custom_call.1} parent=1 // pred_region
      %67 = vsyncadd [#allocation9], 0
      %s68 = sshll.u32 %s3, 4
      %s69 = int_to_ptr.hbm [resolvable:$true] %s68
      %s70 = sshll.u32 [#allocation8], 4
      %s71 = int_to_ptr.vmem [resolvable:$true] %s70
      %76 = dma.hbm_to_vmem [thread:$0]  %s69, 1024, %s71, [#allocation9], 64, 64, 4
    $region17: #{tpu_custom_call.1} parent=1 // pred_fallthru
      _
    // Predicated region
    $region18: #{tpu_custom_call.1} parent=1 // pred_check
      _
    $region19: #{tpu_custom_call.1} parent=1 // pred_check_branch
      %78 = sbr.rel (0) target = $region21
    $region20: #{tpu_custom_call.1} parent=1 // pred_region
      _
    $region21: #{tpu_custom_call.1} parent=1 // pred_fallthru
      _
    // Predicated region
    $region22: #{tpu_custom_call.1} parent=1 // pred_check
      _
    $region23: #{tpu_custom_call.1} parent=1 // pred_check_branch
      %80 = sbr.rel (0) target = $region25
    $region24: #{tpu_custom_call.1} parent=1 // pred_region
      %82 = vsyncadd [#allocation9], 0
      %s83 = sshll.u32 %s5, 4
      %s84 = int_to_ptr.hbm [resolvable:$true] %s83
      %s85 = sshll.u32 [#allocation10], 4
      %s86 = int_to_ptr.vmem [resolvable:$true] %s85
      %91 = dma.hbm_to_vmem [thread:$0]  %s84, 1024, %s86, [#allocation9], 64, 64, 4
    $region25: #{tpu_custom_call.1} parent=1 // pred_fallthru
      _
    // Predicated region
    $region26: #{tpu_custom_call.1} parent=1 // pred_check
      _
    $region27: #{tpu_custom_call.1} parent=1 // pred_check_branch
      %93 = sbr.rel (0) target = $region29
    $region28: #{tpu_custom_call.1} parent=1 // pred_region
      %95 = vsyncadd [#allocation12], 0
      %s96 = sshll.u32 %s6, 4
      %s97 = int_to_ptr.hbm [resolvable:$true] %s96
      %s98 = sshll.u32 [#allocation11], 4
      %s99 = int_to_ptr.vmem [resolvable:$true] %s98
      %104 = dma.hbm_to_vmem [thread:$0]  %s97, 1024, %s99, [#allocation12], 64, 64, 4
    $region29: #{tpu_custom_call.1} parent=1 // pred_fallthru
      _
    // Predicated region
    $region30: #{tpu_custom_call.1} parent=1 // pred_check
      _
    $region31: #{tpu_custom_call.1} parent=1 // pred_check_branch
      %106 = sbr.rel (0) target = $region33
    $region32: #{tpu_custom_call.1} parent=1 // pred_region
      _
    $region33: #{tpu_custom_call.1} parent=1 // pred_fallthru
      _
    // Predicated region
    $region34: #{tpu_custom_call.1} parent=1 // pred_check
      _
    $region35: #{tpu_custom_call.1} parent=1 // pred_check_branch
      %108 = sbr.rel (0) target = $region37
    $region36: #{tpu_custom_call.1} parent=1 // pred_region
      %110 = vsyncadd [#allocation12], 0
      %s111 = sshll.u32 %s8, 4
      %s112 = int_to_ptr.hbm [resolvable:$true] %s111
      %s113 = sshll.u32 [#allocation13], 4
      %s114 = int_to_ptr.vmem [resolvable:$true] %s113
      %119 = dma.hbm_to_vmem [thread:$0]  %s112, 1024, %s114, [#allocation12], 64, 64, 4
    $region37: #{tpu_custom_call.1} parent=1 // pred_fallthru
      _
    // Predicated region
    $region38: #{tpu_custom_call.1} parent=1 // pred_check
      _
    $region39: #{tpu_custom_call.1} parent=1 // pred_check_branch
      %121 = sbr.rel (0) target = $region41
    $region40: #{tpu_custom_call.1} parent=1 // pred_region
      _
    $region41: #{tpu_custom_call.1} parent=1 // pred_fallthru
      _
    // Predicated region
    $region42: #{tpu_custom_call.1} parent=1 // pred_check
      _
    $region43: #{tpu_custom_call.1} parent=1 // pred_check_branch
      %123 = sbr.rel (0) target = $region45
    $region44: #{tpu_custom_call.1} parent=1 // pred_region
      _
    $region45: #{tpu_custom_call.1} parent=1 // pred_fallthru
      _
    // Predicated region
    $region46: #{tpu_custom_call.1} parent=1 // pred_check
      _
    $region47: #{tpu_custom_call.1} parent=1 // pred_check_branch
      %125 = sbr.rel (0) target = $region49
    $region48: #{tpu_custom_call.1} parent=1 // pred_region
      _
    $region49: #{tpu_custom_call.1} parent=1 // pred_fallthru
      _
    // Predicated region
    $region50: #{tpu_custom_call.1} parent=1 // pred_check
      _
    $region51: #{tpu_custom_call.1} parent=1 // pred_check_branch
      %127 = sbr.rel (0) target = $region53
    $region52: #{tpu_custom_call.1} parent=1 // pred_region
      %129 = dma.done [#allocation3], 256
    $region53: #{tpu_custom_call.1} parent=1 // pred_fallthru
      _
    // Predicated region
    $region54: #{tpu_custom_call.1} parent=1 // pred_check
      _
    $region55: #{tpu_custom_call.1} parent=1 // pred_check_branch
      %131 = sbr.rel (0) target = $region57
    $region56: #{tpu_custom_call.1} parent=1 // pred_region
      %133 = dma.done [#allocation6], 256
    $region57: #{tpu_custom_call.1} parent=1 // pred_fallthru
      _
    // Predicated region
    $region58: #{tpu_custom_call.1} parent=1 // pred_check
      _
    $region59: #{tpu_custom_call.1} parent=1 // pred_check_branch
      %135 = sbr.rel (0) target = $region61
    $region60: #{tpu_custom_call.1} parent=1 // pred_region
      %137 = dma.done [#allocation6], 32
    $region61: #{tpu_custom_call.1} parent=1 // pred_fallthru
      _
    // Predicated region
    $region62: #{tpu_custom_call.1} parent=1 // pred_check
      _
    $region63: #{tpu_custom_call.1} parent=1 // pred_check_branch
      %139 = sbr.rel (0) target = $region65
    $region64: #{tpu_custom_call.1} parent=1 // pred_region
      %141 = dma.done [#allocation9], 1024
    $region65: #{tpu_custom_call.1} parent=1 // pred_fallthru
      _
    // Predicated region
    $region66: #{tpu_custom_call.1} parent=1 // pred_check
      _
    $region67: #{tpu_custom_call.1} parent=1 // pred_check_branch
      %143 = sbr.rel (0) target = $region69
    $region68: #{tpu_custom_call.1} parent=1 // pred_region
      %145 = dma.done [#allocation9], 1024
    $region69: #{tpu_custom_call.1} parent=1 // pred_fallthru
      _
    // Predicated region
    $region70: #{tpu_custom_call.1} parent=1 // pred_check
      _
    $region71: #{tpu_custom_call.1} parent=1 // pred_check_branch
      %147 = sbr.rel (0) target = $region73
    $region72: #{tpu_custom_call.1} parent=1 // pred_region
      %149 = dma.done [#allocation12], 1024
    $region73: #{tpu_custom_call.1} parent=1 // pred_fallthru
      _
    // Predicated region
    $region74: #{tpu_custom_call.1} parent=1 // pred_check
      _
    $region75: #{tpu_custom_call.1} parent=1 // pred_check_branch
      %151 = sbr.rel (0) target = $region77
    $region76: #{tpu_custom_call.1} parent=1 // pred_region
      %153 = dma.done [#allocation12], 1024
    $region77: #{tpu_custom_call.1} parent=1 // pred_fallthru
      _
    %v155 = vld [vmem:[#allocation2] sm:$0xff]
    %v156 = vld [vmem:[#allocation2 + $0x8] sm:$0xff]
    %v157 = vpack.c.bf16 %v156, %v155
    %v158 = vld [vmem:[#allocation5] sm:$0xff]
    %v159 = vld [vmem:[#allocation5 + $0x8] sm:$0xff]
    %v160 = vpack.c.bf16 %v159, %v158
    %v161 = vld [vmem:[#allocation8] sm:$0xf]
    %v162 = vld [vmem:[#allocation8 + $0x4] sm:$0xf]
    %v163 = vld [vmem:[#allocation8 + $0x8] sm:$0xf]
    %v164 = vld [vmem:[#allocation8 + $0xc] sm:$0xf]
    %v165 = vld [vmem:[#allocation8 + $0x10] sm:$0xf]
    %v166 = vld [vmem:[#allocation8 + $0x14] sm:$0xf]
    %v167 = vld [vmem:[#allocation8 + $0x18] sm:$0xf]
    %v168 = vld [vmem:[#allocation8 + $0x1c] sm:$0xf]
    %v169 = vld [vmem:[#allocation8 + $0x20] sm:$0xf]
    %v170 = vld [vmem:[#allocation8 + $0x24] sm:$0xf]
    %v171 = vld [vmem:[#allocation8 + $0x28] sm:$0xf]
    %v172 = vld [vmem:[#allocation8 + $0x2c] sm:$0xf]
    %v173 = vld [vmem:[#allocation8 + $0x30] sm:$0xf]
    %v174 = vld [vmem:[#allocation8 + $0x34] sm:$0xf]
    %v175 = vld [vmem:[#allocation8 + $0x38] sm:$0xf]
    %v176 = vld [vmem:[#allocation8 + $0x3c] sm:$0xf]
    %v177 = vld [vmem:[%s4] sm:$0x1]
    %v179 = vperm.slane %v177, 0
    %v197 = vunpack.c.l.b16 %v161
    %v198 = vunpack.c.l.b16 %v162
    %v199 = vunpack.c.l.b16 %v163
    %v200 = vunpack.c.l.b16 %v164
    %v201 = vunpack.c.l.b16 %v165
    %v202 = vunpack.c.l.b16 %v166
    %v203 = vunpack.c.l.b16 %v167
    %v204 = vunpack.c.l.b16 %v168
    %v205 = vunpack.c.l.b16 %v169
    %v206 = vunpack.c.l.b16 %v170
    %v207 = vunpack.c.l.b16 %v171
    %v208 = vunpack.c.l.b16 %v172
    %v209 = vunpack.c.l.b16 %v173
    %v210 = vunpack.c.l.b16 %v174
    %v211 = vunpack.c.l.b16 %v175
    %v212 = vunpack.c.l.b16 %v176
    %v213 = vpack.c.b16 %v198, %v197
    %v214 = vpack.c.b16 %v200, %v199
    %v215 = vpack.c.b16 %v202, %v201
    %v216 = vpack.c.b16 %v204, %v203
    %v217 = vpack.c.b16 %v206, %v205
    %v218 = vpack.c.b16 %v208, %v207
    %v219 = vpack.c.b16 %v210, %v209
    %v220 = vpack.c.b16 %v212, %v211
    %229 = vmatpush.bf16.msra.mxu0 %v220
    %230 = vmatpush.bf16.msra.mxu0 %v219
    %231 = vmatpush.bf16.msra.mxu0 %v218
    %232 = vmatpush.bf16.msra.mxu0 %v217
    %233 = vmatpush.bf16.msra.mxu0 %v216
    %234 = vmatpush.bf16.msra.mxu0 %v215
    %235 = vmatpush.bf16.msra.mxu0 %v214
    %236 = vmatpush.bf16.msra.mxu0 %v213
    %237 = vmatmul.bf16.gmra.mxu0 %v157
    %v238 = vpop.f32.mrf.mxu0
    %v239 = vadd.f32 %v179, %v238
    %v240 = vpop.f32.mrf.mxu0
    %v241 = vadd.f32 %v179, %v240
    %242 = vdwg.mxu0
    %v243 = vld [vmem:[#allocation10] sm:$0xf]
    %v244 = vld [vmem:[#allocation10 + $0x4] sm:$0xf]
    %v245 = vld [vmem:[#allocation10 + $0x8] sm:$0xf]
    %v246 = vld [vmem:[#allocation10 + $0xc] sm:$0xf]
    %v247 = vld [vmem:[#allocation10 + $0x10] sm:$0xf]
    %v248 = vld [vmem:[#allocation10 + $0x14] sm:$0xf]
    %v249 = vld [vmem:[#allocation10 + $0x18] sm:$0xf]
    %v250 = vld [vmem:[#allocation10 + $0x1c] sm:$0xf]
    %v251 = vld [vmem:[#allocation10 + $0x20] sm:$0xf]
    %v252 = vld [vmem:[#allocation10 + $0x24] sm:$0xf]
    %v253 = vld [vmem:[#allocation10 + $0x28] sm:$0xf]
    %v254 = vld [vmem:[#allocation10 + $0x2c] sm:$0xf]
    %v255 = vld [vmem:[#allocation10 + $0x30] sm:$0xf]
    %v256 = vld [vmem:[#allocation10 + $0x34] sm:$0xf]
    %v257 = vld [vmem:[#allocation10 + $0x38] sm:$0xf]
    %v258 = vld [vmem:[#allocation10 + $0x3c] sm:$0xf]
    %v275 = vunpack.c.l.b16 %v243
    %v276 = vunpack.c.l.b16 %v244
    %v277 = vunpack.c.l.b16 %v245
    %v278 = vunpack.c.l.b16 %v246
    %v279 = vunpack.c.l.b16 %v247
    %v280 = vunpack.c.l.b16 %v248
    %v281 = vunpack.c.l.b16 %v249
    %v282 = vunpack.c.l.b16 %v250
    %v283 = vunpack.c.l.b16 %v251
    %v284 = vunpack.c.l.b16 %v252
    %v285 = vunpack.c.l.b16 %v253
    %v286 = vunpack.c.l.b16 %v254
    %v287 = vunpack.c.l.b16 %v255
    %v288 = vunpack.c.l.b16 %v256
    %v289 = vunpack.c.l.b16 %v257
    %v290 = vunpack.c.l.b16 %v258
    %v291 = vpack.c.b16 %v276, %v275
    %v292 = vpack.c.b16 %v278, %v277
    %v293 = vpack.c.b16 %v280, %v279
    %v294 = vpack.c.b16 %v282, %v281
    %v295 = vpack.c.b16 %v284, %v283
    %v296 = vpack.c.b16 %v286, %v285
    %v297 = vpack.c.b16 %v288, %v287
    %v298 = vpack.c.b16 %v290, %v289
    %307 = vmatpush.bf16.msra.mxu0 %v298
    %308 = vmatpush.bf16.msra.mxu0 %v297
    %309 = vmatpush.bf16.msra.mxu0 %v296
    %310 = vmatpush.bf16.msra.mxu0 %v295
    %311 = vmatpush.bf16.msra.mxu0 %v294
    %312 = vmatpush.bf16.msra.mxu0 %v293
    %313 = vmatpush.bf16.msra.mxu0 %v292
    %314 = vmatpush.bf16.msra.mxu0 %v291
    %315 = vmatmul.bf16.gmra.mxu0 %v160
    %v316 = vpop.f32.mrf.mxu0
    %v317 = vadd.f32 0.0, %v316
    %v318 = vpop.f32.mrf.mxu0
    %v319 = vadd.f32 0.0, %v318
    %320 = vdwg.mxu0
    %v321 = vld [vmem:[#allocation11] sm:$0xf]
    %v322 = vld [vmem:[#allocation11 + $0x4] sm:$0xf]
    %v323 = vld [vmem:[#allocation11 + $0x8] sm:$0xf]
    %v324 = vld [vmem:[#allocation11 + $0xc] sm:$0xf]
    %v325 = vld [vmem:[#allocation11 + $0x10] sm:$0xf]
    %v326 = vld [vmem:[#allocation11 + $0x14] sm:$0xf]
    %v327 = vld [vmem:[#allocation11 + $0x18] sm:$0xf]
    %v328 = vld [vmem:[#allocation11 + $0x1c] sm:$0xf]
    %v329 = vld [vmem:[#allocation11 + $0x20] sm:$0xf]
    %v330 = vld [vmem:[#allocation11 + $0x24] sm:$0xf]
    %v331 = vld [vmem:[#allocation11 + $0x28] sm:$0xf]
    %v332 = vld [vmem:[#allocation11 + $0x2c] sm:$0xf]
    %v333 = vld [vmem:[#allocation11 + $0x30] sm:$0xf]
    %v334 = vld [vmem:[#allocation11 + $0x34] sm:$0xf]
    %v335 = vld [vmem:[#allocation11 + $0x38] sm:$0xf]
    %v336 = vld [vmem:[#allocation11 + $0x3c] sm:$0xf]
    %v337 = vld [vmem:[%s7] sm:$0x1]
    %v339 = vperm.slane %v337, 0
    %v357 = vunpack.c.l.b16 %v321
    %v358 = vunpack.c.l.b16 %v322
    %v359 = vunpack.c.l.b16 %v323
    %v360 = vunpack.c.l.b16 %v324
    %v361 = vunpack.c.l.b16 %v325
    %v362 = vunpack.c.l.b16 %v326
    %v363 = vunpack.c.l.b16 %v327
    %v364 = vunpack.c.l.b16 %v328
    %v365 = vunpack.c.l.b16 %v329
    %v366 = vunpack.c.l.b16 %v330
    %v367 = vunpack.c.l.b16 %v331
    %v368 = vunpack.c.l.b16 %v332
    %v369 = vunpack.c.l.b16 %v333
    %v370 = vunpack.c.l.b16 %v334
    %v371 = vunpack.c.l.b16 %v335
    %v372 = vunpack.c.l.b16 %v336
    %v373 = vpack.c.b16 %v358, %v357
    %v374 = vpack.c.b16 %v360, %v359
    %v375 = vpack.c.b16 %v362, %v361
    %v376 = vpack.c.b16 %v364, %v363
    %v377 = vpack.c.b16 %v366, %v365
    %v378 = vpack.c.b16 %v368, %v367
    %v379 = vpack.c.b16 %v370, %v369
    %v380 = vpack.c.b16 %v372, %v371
    %389 = vmatpush.bf16.msra.mxu0 %v380
    %390 = vmatpush.bf16.msra.mxu0 %v379
    %391 = vmatpush.bf16.msra.mxu0 %v378
    %392 = vmatpush.bf16.msra.mxu0 %v377
    %393 = vmatpush.bf16.msra.mxu0 %v376
    %394 = vmatpush.bf16.msra.mxu0 %v375
    %395 = vmatpush.bf16.msra.mxu0 %v374
    %396 = vmatpush.bf16.msra.mxu0 %v373
    %397 = vmatmul.bf16.gmra.mxu0 %v160
    %v398 = vpop.f32.mrf.mxu0
    %v399 = vadd.f32 %v339, %v398
    %v400 = vpop.f32.mrf.mxu0
    %v401 = vadd.f32 %v339, %v400
    %402 = vdwg.mxu0
    %v403 = vmul.f32 %v239, 0.17677669
    %v404 = vmul.f32 %v241, 0.17677669
    %v405 = vpack.c.bf16 %v403, %v403
    %v406 = vpack.c.bf16 %v404, %v404
    %v407 = vpack.c.bf16 %v317, %v317
    %v408 = vpack.c.bf16 %v319, %v319
    %v409 = vpack.c.bf16 %v399, %v399
    %v410 = vpack.c.bf16 %v401, %v401
    %v411 = vld [vmem:[#allocation7] sm:$0x1]
    %v412 = vld [vmem:[#allocation7 + $0x1] sm:$0x1]
    %v414 = vperm.slane %v411, 0
    %vm416 = vcmask 261120
    %v418 = vsel %vm416, %v405, 0
    %v421 = vsel %vm416, %v407, 0
    %423 = vmatpush.bf16.xpose.msra.mxu0 0
    %424 = vmatpush.bf16.xpose.msra.mxu0 0
    %425 = vmatpush.bf16.xpose.msra.mxu0 0
    %426 = vmatpush.bf16.xpose.msra.mxu0 0
    %427 = vmatpush.bf16.xpose.msra.mxu0 0
    %428 = vmatpush.bf16.xpose.msra.mxu0 0
    %429 = vmatpush.bf16.xpose.msra.mxu0 0
    %430 = vmatpush.bf16.xpose.msra.mxu0 %v421
    %431 = vmatmul.bf16.gmra.mxu0 %v418
    %v432 = vpop.f32.mrf.mxu0
    %v433 = vadd.f32 %v414, %v432
    %v434 = vpop.f32.mrf.mxu0
    %435 = vdwg.mxu0
    %vm436 = vcmask 64512
    %v437 = vsel %vm436, %v433, -inf
    %438 = vmax.xlane.f32.xlu0 %v437
    %v439 = vpop.xlane.xlu0 %438
    %v440 = vsub.f32 %v433, %v439
    %v441 = vmul.f32 %v440, 1.442695
    %v442 = vpow.pop %v441
    %v443 = vsel %vm436, %v442, 0.0
    %444 = vadd.xlane.f32.xlu0 %v443
    %v445 = vpop.xlane.xlu0 %444
    %v446 = vrcp.pop %v445
    %v447 = vmul.f32 %v442, %v446
    %448 = vst.msk [vmem:[#allocation15] sm:$0xff] %vm436, %v447
    %v449 = vpack.c.bf16 %v447, %v447
    %v451 = vsel %vm436, %v449, 0
    %vm453 = vcmask 1043456
    %v455 = vsel %vm453, %v409, 0
    %457 = vmatpush.bf16.msra.mxu0 0
    %458 = vmatpush.bf16.msra.mxu0 0
    %459 = vmatpush.bf16.msra.mxu0 0
    %460 = vmatpush.bf16.msra.mxu0 0
    %461 = vmatpush.bf16.msra.mxu0 0
    %462 = vmatpush.bf16.msra.mxu0 0
    %463 = vmatpush.bf16.msra.mxu0 0
    %464 = vmatpush.bf16.msra.mxu0 %v455
    %465 = vmatmul.bf16.gmra.mxu0 %v451
    %v466 = vpop.f32.mrf.mxu0
    %v467 = vadd.f32 0.0, %v466
    %v468 = vpop.f32.mrf.mxu0
    %469 = vdwg.mxu0
    %v470 = vpack.c.bf16 %v467, %v467
    %v471 = vld [vmem:[#allocation13] sm:$0xf]
    %v472 = vld [vmem:[#allocation13 + $0x4] sm:$0xf]
    %v473 = vld [vmem:[#allocation13 + $0x8] sm:$0xf]
    %v474 = vld [vmem:[#allocation13 + $0xc] sm:$0xf]
    %v476 = vunpack.c.l.b16 %v405
    %v477 = vpack.c.b16 %v476, %v476
    %478 = vrot.lane.b32.xlu0 %v477, 96
    %v479 = vpop.permute.xlu0 %478
    %v481 = vunpack.c.l.b16 %v407
    %v482 = vpack.c.b16 %v481, %v481
    %483 = vrot.lane.b32.xlu0 %v482, 96
    %v484 = vpop.permute.xlu0 %483
    %v486 = vsel %vm416, %v479, 0
    %v489 = vsel %vm416, %v484, 0
    %491 = vmatpush.bf16.xpose.msra.mxu0 0
    %492 = vmatpush.bf16.xpose.msra.mxu0 0
    %493 = vmatpush.bf16.xpose.msra.mxu0 0
    %494 = vmatpush.bf16.xpose.msra.mxu0 0
    %495 = vmatpush.bf16.xpose.msra.mxu0 0
    %496 = vmatpush.bf16.xpose.msra.mxu0 0
    %497 = vmatpush.bf16.xpose.msra.mxu0 0
    %498 = vmatpush.bf16.xpose.msra.mxu0 %v489
    %499 = vmatmul.bf16.gmra.mxu0 %v486
    %v500 = vpop.f32.mrf.mxu0
    %v501 = vadd.f32 %v414, %v500
    %v502 = vpop.f32.mrf.mxu0
    %503 = vdwg.mxu0
    %v504 = vsel %vm436, %v501, -inf
    %505 = vmax.xlane.f32.xlu0 %v504
    %v506 = vpop.xlane.xlu0 %505
    %v507 = vsub.f32 %v501, %v506
    %v508 = vmul.f32 %v507, 1.442695
    %v509 = vpow.pop %v508
    %v510 = vsel %vm436, %v509, 0.0
    %511 = vadd.xlane.f32.xlu0 %v510
    %v512 = vpop.xlane.xlu0 %511
    %v513 = vrcp.pop %v512
    %v514 = vmul.f32 %v509, %v513
    %s515 = scalar_lea.vmem [#allocation15], 8
    %516 = vst.msk [vmem:[%s515] sm:$0xff] %vm436, %v514
    %v517 = vpack.c.bf16 %v514, %v514
    %v519 = vunpack.c.l.b16 %v409
    %v520 = vpack.c.b16 %v519, %v519
    %521 = vrot.lane.b32.xlu0 %v520, 96
    %v522 = vpop.permute.xlu0 %521
    %v524 = vsel %vm436, %v517, 0
    %v527 = vsel %vm453, %v522, 0
    %529 = vmatpush.bf16.msra.mxu0 0
    %530 = vmatpush.bf16.msra.mxu0 0
    %531 = vmatpush.bf16.msra.mxu0 0
    %532 = vmatpush.bf16.msra.mxu0 0
    %533 = vmatpush.bf16.msra.mxu0 0
    %534 = vmatpush.bf16.msra.mxu0 0
    %535 = vmatpush.bf16.msra.mxu0 0
    %536 = vmatpush.bf16.msra.mxu0 %v527
    %537 = vmatmul.bf16.gmra.mxu0 %v524
    %v538 = vpop.f32.mrf.mxu0
    %v539 = vadd.f32 0.0, %v538
    %v540 = vpop.f32.mrf.mxu0
    %541 = vdwg.mxu0
    %v542 = vpack.c.bf16 %v539, %v539
    %s543 = scalar_lea.vmem [#allocation13], 16
    %v544 = vld [vmem:[%s543] sm:$0xf]
    %v545 = vld [vmem:[%s543 + $0x4] sm:$0xf]
    %v546 = vld [vmem:[%s543 + $0x8] sm:$0xf]
    %v547 = vld [vmem:[%s543 + $0xc] sm:$0xf]
    %v552 = vunpack.c.l.b16 %v544
    %v553 = vunpack.c.l.b16 %v545
    %v554 = vunpack.c.l.b16 %v546
    %v555 = vunpack.c.l.b16 %v547
    %v556 = vpack.c.b16 %v553, %v552
    %v557 = vpack.c.b16 %v555, %v554
    %v561 = vsel %vm416, %v542, 0
    %563 = vmatpush.bf16.msra.mxu0 0
    %564 = vmatpush.bf16.msra.mxu0 0
    %565 = vmatpush.bf16.msra.mxu0 0
    %566 = vmatpush.bf16.msra.mxu0 0
    %567 = vmatpush.bf16.msra.mxu0 0
    %568 = vmatpush.bf16.msra.mxu0 0
    %569 = vmatpush.bf16.msra.mxu0 %v557
    %570 = vmatpush.bf16.msra.mxu0 %v556
    %571 = vmatmul.bf16.gmra.mxu0 %v561
    %v572 = vpop.f32.mrf.mxu0
    %v573 = vadd.f32 0.0, %v572
    %v574 = vpop.f32.mrf.mxu0
    %575 = vdwg.mxu0
    %v580 = vunpack.c.l.b16 %v471
    %v581 = vunpack.c.l.b16 %v472
    %v582 = vunpack.c.l.b16 %v473
    %v583 = vunpack.c.l.b16 %v474
    %v584 = vpack.c.b16 %v581, %v580
    %v585 = vpack.c.b16 %v583, %v582
    %v589 = vsel %vm416, %v470, 0
    %591 = vmatpush.bf16.msra.mxu0 0
    %592 = vmatpush.bf16.msra.mxu0 0
    %593 = vmatpush.bf16.msra.mxu0 0
    %594 = vmatpush.bf16.msra.mxu0 0
    %595 = vmatpush.bf16.msra.mxu0 0
    %596 = vmatpush.bf16.msra.mxu0 0
    %597 = vmatpush.bf16.msra.mxu0 %v585
    %598 = vmatpush.bf16.msra.mxu0 %v584
    %599 = vmatmul.bf16.gmra.mxu0 %v589
    %v600 = vpop.f32.mrf.mxu0
    %v601 = vadd.f32 %v573, %v600
    %v602 = vpop.f32.mrf.mxu0
    %603 = vdwg.mxu0
    %604 = vrot.lane.b32.xlu0 %v477, 64
    %v605 = vpop.permute.xlu0 %604
    %606 = vrot.lane.b32.xlu0 %v482, 64
    %v607 = vpop.permute.xlu0 %606
    %v609 = vsel %vm416, %v605, 0
    %v612 = vsel %vm416, %v607, 0
    %614 = vmatpush.bf16.xpose.msra.mxu0 0
    %615 = vmatpush.bf16.xpose.msra.mxu0 0
    %616 = vmatpush.bf16.xpose.msra.mxu0 0
    %617 = vmatpush.bf16.xpose.msra.mxu0 0
    %618 = vmatpush.bf16.xpose.msra.mxu0 0
    %619 = vmatpush.bf16.xpose.msra.mxu0 0
    %620 = vmatpush.bf16.xpose.msra.mxu0 0
    %621 = vmatpush.bf16.xpose.msra.mxu0 %v612
    %622 = vmatmul.bf16.gmra.mxu0 %v609
    %v623 = vpop.f32.mrf.mxu0
    %v624 = vadd.f32 %v414, %v623
    %v625 = vpop.f32.mrf.mxu0
    %626 = vdwg.mxu0
    %v627 = vsel %vm436, %v624, -inf
    %628 = vmax.xlane.f32.xlu0 %v627
    %v629 = vpop.xlane.xlu0 %628
    %v630 = vsub.f32 %v624, %v629
    %v631 = vmul.f32 %v630, 1.442695
    %v632 = vpow.pop %v631
    %v633 = vsel %vm436, %v632, 0.0
    %634 = vadd.xlane.f32.xlu0 %v633
    %v635 = vpop.xlane.xlu0 %634
    %v636 = vrcp.pop %v635
    %v637 = vmul.f32 %v632, %v636
    %s638 = scalar_lea.vmem [#allocation15], 16
    %639 = vst.msk [vmem:[%s638] sm:$0xff] %vm436, %v637
    %v640 = vpack.c.bf16 %v637, %v637
    %641 = vrot.lane.b32.xlu0 %v520, 64
    %v642 = vpop.permute.xlu0 %641
    %v644 = vsel %vm436, %v640, 0
    %v647 = vsel %vm453, %v642, 0
    %649 = vmatpush.bf16.msra.mxu0 0
    %650 = vmatpush.bf16.msra.mxu0 0
    %651 = vmatpush.bf16.msra.mxu0 0
    %652 = vmatpush.bf16.msra.mxu0 0
    %653 = vmatpush.bf16.msra.mxu0 0
    %654 = vmatpush.bf16.msra.mxu0 0
    %655 = vmatpush.bf16.msra.mxu0 0
    %656 = vmatpush.bf16.msra.mxu0 %v647
    %657 = vmatmul.bf16.gmra.mxu0 %v644
    %v658 = vpop.f32.mrf.mxu0
    %v659 = vadd.f32 0.0, %v658
    %v660 = vpop.f32.mrf.mxu0
    %661 = vdwg.mxu0
    %v662 = vpack.c.bf16 %v659, %v659
    %s663 = scalar_lea.vmem [#allocation13], 32
    %v664 = vld [vmem:[%s663] sm:$0xf]
    %v665 = vld [vmem:[%s663 + $0x4] sm:$0xf]
    %v666 = vld [vmem:[%s663 + $0x8] sm:$0xf]
    %v667 = vld [vmem:[%s663 + $0xc] sm:$0xf]
    %v672 = vunpack.c.l.b16 %v664
    %v673 = vunpack.c.l.b16 %v665
    %v674 = vunpack.c.l.b16 %v666
    %v675 = vunpack.c.l.b16 %v667
    %v676 = vpack.c.b16 %v673, %v672
    %v677 = vpack.c.b16 %v675, %v674
    %v681 = vsel %vm416, %v662, 0
    %683 = vmatpush.bf16.msra.mxu0 0
    %684 = vmatpush.bf16.msra.mxu0 0
    %685 = vmatpush.bf16.msra.mxu0 0
    %686 = vmatpush.bf16.msra.mxu0 0
    %687 = vmatpush.bf16.msra.mxu0 0
    %688 = vmatpush.bf16.msra.mxu0 0
    %689 = vmatpush.bf16.msra.mxu0 %v677
    %690 = vmatpush.bf16.msra.mxu0 %v676
    %691 = vmatmul.bf16.gmra.mxu0 %v681
    %v692 = vpop.f32.mrf.mxu0
    %v693 = vadd.f32 0.0, %v692
    %v694 = vpop.f32.mrf.mxu0
    %695 = vdwg.mxu0
    %v696 = vadd.f32 %v601, %v693
    %697 = vrot.lane.b32.xlu0 %v477, 32
    %v698 = vpop.permute.xlu0 %697
    %699 = vrot.lane.b32.xlu0 %v482, 32
    %v700 = vpop.permute.xlu0 %699
    %v702 = vsel %vm416, %v698, 0
    %v705 = vsel %vm416, %v700, 0
    %707 = vmatpush.bf16.xpose.msra.mxu0 0
    %708 = vmatpush.bf16.xpose.msra.mxu0 0
    %709 = vmatpush.bf16.xpose.msra.mxu0 0
    %710 = vmatpush.bf16.xpose.msra.mxu0 0
    %711 = vmatpush.bf16.xpose.msra.mxu0 0
    %712 = vmatpush.bf16.xpose.msra.mxu0 0
    %713 = vmatpush.bf16.xpose.msra.mxu0 0
    %714 = vmatpush.bf16.xpose.msra.mxu0 %v705
    %715 = vmatmul.bf16.gmra.mxu0 %v702
    %v716 = vpop.f32.mrf.mxu0
    %v717 = vadd.f32 %v414, %v716
    %v718 = vpop.f32.mrf.mxu0
    %719 = vdwg.mxu0
    %v720 = vsel %vm436, %v717, -inf
    %721 = vmax.xlane.f32.xlu0 %v720
    %v722 = vpop.xlane.xlu0 %721
    %v723 = vsub.f32 %v717, %v722
    %v724 = vmul.f32 %v723, 1.442695
    %v725 = vpow.pop %v724
    %v726 = vsel %vm436, %v725, 0.0
    %727 = vadd.xlane.f32.xlu0 %v726
    %v728 = vpop.xlane.xlu0 %727
    %v729 = vrcp.pop %v728
    %v730 = vmul.f32 %v725, %v729
    %s731 = scalar_lea.vmem [#allocation15], 24
    %732 = vst.msk [vmem:[%s731] sm:$0xff] %vm436, %v730
    %v733 = vpack.c.bf16 %v730, %v730
    %734 = vrot.lane.b32.xlu0 %v520, 32
    %v735 = vpop.permute.xlu0 %734
    %v737 = vsel %vm436, %v733, 0
    %v740 = vsel %vm453, %v735, 0
    %742 = vmatpush.bf16.msra.mxu0 0
    %743 = vmatpush.bf16.msra.mxu0 0
    %744 = vmatpush.bf16.msra.mxu0 0
    %745 = vmatpush.bf16.msra.mxu0 0
    %746 = vmatpush.bf16.msra.mxu0 0
    %747 = vmatpush.bf16.msra.mxu0 0
    %748 = vmatpush.bf16.msra.mxu0 0
    %749 = vmatpush.bf16.msra.mxu0 %v740
    %750 = vmatmul.bf16.gmra.mxu0 %v737
    %v751 = vpop.f32.mrf.mxu0
    %v752 = vadd.f32 0.0, %v751
    %v753 = vpop.f32.mrf.mxu0
    %754 = vdwg.mxu0
    %v755 = vpack.c.bf16 %v752, %v752
    %s756 = scalar_lea.vmem [#allocation13], 48
    %v757 = vld [vmem:[%s756] sm:$0xf]
    %v758 = vld [vmem:[%s756 + $0x4] sm:$0xf]
    %v759 = vld [vmem:[%s756 + $0x8] sm:$0xf]
    %v760 = vld [vmem:[%s756 + $0xc] sm:$0xf]
    %v765 = vunpack.c.l.b16 %v757
    %v766 = vunpack.c.l.b16 %v758
    %v767 = vunpack.c.l.b16 %v759
    %v768 = vunpack.c.l.b16 %v760
    %v769 = vpack.c.b16 %v766, %v765
    %v770 = vpack.c.b16 %v768, %v767
    %v774 = vsel %vm416, %v755, 0
    %776 = vmatpush.bf16.msra.mxu0 0
    %777 = vmatpush.bf16.msra.mxu0 0
    %778 = vmatpush.bf16.msra.mxu0 0
    %779 = vmatpush.bf16.msra.mxu0 0
    %780 = vmatpush.bf16.msra.mxu0 0
    %781 = vmatpush.bf16.msra.mxu0 0
    %782 = vmatpush.bf16.msra.mxu0 %v770
    %783 = vmatpush.bf16.msra.mxu0 %v769
    %784 = vmatmul.bf16.gmra.mxu0 %v774
    %v785 = vpop.f32.mrf.mxu0
    %v786 = vadd.f32 0.0, %v785
    %v787 = vpop.f32.mrf.mxu0
    %788 = vdwg.mxu0
    %v789 = vadd.f32 %v696, %v786
    %v790 = vld [vmem:[%s9] sm:$0x1]
    %v792 = vperm.slane %v790, 0
    %v794 = vadd.f32 %v789, %v792
    %v795 = vadd.f32 %v794, %v155
    %796 = vadd.xlane.f32.xlu0 %v795
    %v797 = vpop.xlane.xlu0 %796
    %v798 = vrcp.pop 128.0
    %v799 = vmul.f32 128.0, %v798
    %v800 = vsub.f32 1.0, %v799
    %v801 = vmul.f32 %v798, %v800
    %v802 = vadd.f32 %v798, %v801
    %vm803 = vweird.f32 %v798
    %v804 = vsel %vm803, %v798, %v802
    %v805 = vmul.f32 %v797, %v804
    %v806 = vsub.f32 %v795, %v805
    %v807 = vmul.f32 %v806, %v806
    %808 = vadd.xlane.f32.xlu0 %v807
    %v809 = vpop.xlane.xlu0 %808
    %v810 = vmul.f32 %v809, %v804
    %v811 = vadd.f32 %v810, 1e-12
    %v812 = vrsqrt.pop %v811
    %v813 = vmul.f32 %v812, %v811
    %v814 = vmul.f32 %v813, %v812
    %v815 = vmul.f32 0.5, %v814
    %v816 = vsub.f32 1.5, %v815
    %v817 = vmul.f32 %v812, %v816
    %vm818 = vweird.f32 %v811
    %vm819 = vweird.f32 %v812
    %vm820 = vmor %vm818, %vm819
    %v821 = vsel %vm820, %v812, %v817
    %v822 = vmul.f32 %v806, %v821
    %v823 = vld [vmem:[%s10] sm:$0x1]
    %v825 = vperm.slane %v823, 0
    %v827 = vmul.f32 %v822, %v825
    %v828 = vld [vmem:[%s11] sm:$0x1]
    %v830 = vperm.slane %v828, 0
    %v832 = vadd.f32 %v827, %v830
    %833 = vst [vmem:[#allocation14] sm:$0xff] %v832
    %v835 = vperm.slane %v412, 0
    %v838 = vsel %vm416, %v406, 0
    %v841 = vsel %vm416, %v408, 0
    %843 = vmatpush.bf16.xpose.msra.mxu0 0
    %844 = vmatpush.bf16.xpose.msra.mxu0 0
    %845 = vmatpush.bf16.xpose.msra.mxu0 0
    %846 = vmatpush.bf16.xpose.msra.mxu0 0
    %847 = vmatpush.bf16.xpose.msra.mxu0 0
    %848 = vmatpush.bf16.xpose.msra.mxu0 0
    %849 = vmatpush.bf16.xpose.msra.mxu0 0
    %850 = vmatpush.bf16.xpose.msra.mxu0 %v841
    %851 = vmatmul.bf16.gmra.mxu0 %v838
    %v852 = vpop.f32.mrf.mxu0
    %v853 = vadd.f32 %v835, %v852
    %v854 = vpop.f32.mrf.mxu0
    %855 = vdwg.mxu0
    %v856 = vsel %vm436, %v853, -inf
    %857 = vmax.xlane.f32.xlu0 %v856
    %v858 = vpop.xlane.xlu0 %857
    %v859 = vsub.f32 %v853, %v858
    %v860 = vmul.f32 %v859, 1.442695
    %v861 = vpow.pop %v860
    %v862 = vsel %vm436, %v861, 0.0
    %863 = vadd.xlane.f32.xlu0 %v862
    %v864 = vpop.xlane.xlu0 %863
    %v865 = vrcp.pop %v864
    %v866 = vmul.f32 %v861, %v865
    %s867 = scalar_lea.vmem [#allocation15], 32
    %868 = vst.msk [vmem:[%s867] sm:$0xff] %vm436, %v866
    %v869 = vpack.c.bf16 %v866, %v866
    %v871 = vsel %vm436, %v869, 0
    %v874 = vsel %vm453, %v410, 0
    %876 = vmatpush.bf16.msra.mxu0 0
    %877 = vmatpush.bf16.msra.mxu0 0
    %878 = vmatpush.bf16.msra.mxu0 0
    %879 = vmatpush.bf16.msra.mxu0 0
    %880 = vmatpush.bf16.msra.mxu0 0
    %881 = vmatpush.bf16.msra.mxu0 0
    %882 = vmatpush.bf16.msra.mxu0 0
    %883 = vmatpush.bf16.msra.mxu0 %v874
    %884 = vmatmul.bf16.gmra.mxu0 %v871
    %v885 = vpop.f32.mrf.mxu0
    %v886 = vadd.f32 0.0, %v885
    %v887 = vpop.f32.mrf.mxu0
    %888 = vdwg.mxu0
    %v889 = vpack.c.bf16 %v886, %v886
    %v890 = vld [vmem:[#allocation13] sm:$0xf]
    %v891 = vld [vmem:[#allocation13 + $0x4] sm:$0xf]
    %v892 = vld [vmem:[#allocation13 + $0x8] sm:$0xf]
    %v893 = vld [vmem:[#allocation13 + $0xc] sm:$0xf]
    %v895 = vunpack.c.l.b16 %v406
    %v896 = vpack.c.b16 %v895, %v895
    %897 = vrot.lane.b32.xlu0 %v896, 96
    %v898 = vpop.permute.xlu0 %897
    %v900 = vunpack.c.l.b16 %v408
    %v901 = vpack.c.b16 %v900, %v900
    %902 = vrot.lane.b32.xlu0 %v901, 96
    %v903 = vpop.permute.xlu0 %902
    %v905 = vsel %vm416, %v898, 0
    %v908 = vsel %vm416, %v903, 0
    %910 = vmatpush.bf16.xpose.msra.mxu0 0
    %911 = vmatpush.bf16.xpose.msra.mxu0 0
    %912 = vmatpush.bf16.xpose.msra.mxu0 0
    %913 = vmatpush.bf16.xpose.msra.mxu0 0
    %914 = vmatpush.bf16.xpose.msra.mxu0 0
    %915 = vmatpush.bf16.xpose.msra.mxu0 0
    %916 = vmatpush.bf16.xpose.msra.mxu0 0
    %917 = vmatpush.bf16.xpose.msra.mxu0 %v908
    %918 = vmatmul.bf16.gmra.mxu0 %v905
    %v919 = vpop.f32.mrf.mxu0
    %v920 = vadd.f32 %v835, %v919
    %v921 = vpop.f32.mrf.mxu0
    %922 = vdwg.mxu0
    %v923 = vsel %vm436, %v920, -inf
    %924 = vmax.xlane.f32.xlu0 %v923
    %v925 = vpop.xlane.xlu0 %924
    %v926 = vsub.f32 %v920, %v925
    %v927 = vmul.f32 %v926, 1.442695
    %v928 = vpow.pop %v927
    %v929 = vsel %vm436, %v928, 0.0
    %930 = vadd.xlane.f32.xlu0 %v929
    %v931 = vpop.xlane.xlu0 %930
    %v932 = vrcp.pop %v931
    %v933 = vmul.f32 %v928, %v932
    %s934 = scalar_lea.vmem [#allocation15], 40
    %935 = vst.msk [vmem:[%s934] sm:$0xff] %vm436, %v933
    %v936 = vpack.c.bf16 %v933, %v933
    %v938 = vunpack.c.l.b16 %v410
    %v939 = vpack.c.b16 %v938, %v938
    %940 = vrot.lane.b32.xlu0 %v939, 96
    %v941 = vpop.permute.xlu0 %940
    %v943 = vsel %vm436, %v936, 0
    %v946 = vsel %vm453, %v941, 0
    %948 = vmatpush.bf16.msra.mxu0 0
    %949 = vmatpush.bf16.msra.mxu0 0
    %950 = vmatpush.bf16.msra.mxu0 0
    %951 = vmatpush.bf16.msra.mxu0 0
    %952 = vmatpush.bf16.msra.mxu0 0
    %953 = vmatpush.bf16.msra.mxu0 0
    %954 = vmatpush.bf16.msra.mxu0 0
    %955 = vmatpush.bf16.msra.mxu0 %v946
    %956 = vmatmul.bf16.gmra.mxu0 %v943
    %v957 = vpop.f32.mrf.mxu0
    %v958 = vadd.f32 0.0, %v957
    %v959 = vpop.f32.mrf.mxu0
    %960 = vdwg.mxu0
    %v961 = vpack.c.bf16 %v958, %v958
    %v962 = vld [vmem:[%s543] sm:$0xf]
    %v963 = vld [vmem:[%s543 + $0x4] sm:$0xf]
    %v964 = vld [vmem:[%s543 + $0x8] sm:$0xf]
    %v965 = vld [vmem:[%s543 + $0xc] sm:$0xf]
    %v970 = vunpack.c.l.b16 %v962
    %v971 = vunpack.c.l.b16 %v963
    %v972 = vunpack.c.l.b16 %v964
    %v973 = vunpack.c.l.b16 %v965
    %v974 = vpack.c.b16 %v971, %v970
    %v975 = vpack.c.b16 %v973, %v972
    %v979 = vsel %vm416, %v961, 0
    %981 = vmatpush.bf16.msra.mxu0 0
    %982 = vmatpush.bf16.msra.mxu0 0
    %983 = vmatpush.bf16.msra.mxu0 0
    %984 = vmatpush.bf16.msra.mxu0 0
    %985 = vmatpush.bf16.msra.mxu0 0
    %986 = vmatpush.bf16.msra.mxu0 0
    %987 = vmatpush.bf16.msra.mxu0 %v975
    %988 = vmatpush.bf16.msra.mxu0 %v974
    %989 = vmatmul.bf16.gmra.mxu0 %v979
    %v990 = vpop.f32.mrf.mxu0
    %v991 = vadd.f32 0.0, %v990
    %v992 = vpop.f32.mrf.mxu0
    %993 = vdwg.mxu0
    %v998 = vunpack.c.l.b16 %v890
    %v999 = vunpack.c.l.b16 %v891
    %v1000 = vunpack.c.l.b16 %v892
    %v1001 = vunpack.c.l.b16 %v893
    %v1002 = vpack.c.b16 %v999, %v998
    %v1003 = vpack.c.b16 %v1001, %v1000
    %v1007 = vsel %vm416, %v889, 0
    %1009 = vmatpush.bf16.msra.mxu0 0
    %1010 = vmatpush.bf16.msra.mxu0 0
    %1011 = vmatpush.bf16.msra.mxu0 0
    %1012 = vmatpush.bf16.msra.mxu0 0
    %1013 = vmatpush.bf16.msra.mxu0 0
    %1014 = vmatpush.bf16.msra.mxu0 0
    %1015 = vmatpush.bf16.msra.mxu0 %v1003
    %1016 = vmatpush.bf16.msra.mxu0 %v1002
    %1017 = vmatmul.bf16.gmra.mxu0 %v1007
    %v1018 = vpop.f32.mrf.mxu0
    %v1019 = vadd.f32 %v991, %v1018
    %v1020 = vpop.f32.mrf.mxu0
    %1021 = vdwg.mxu0
    %1022 = vrot.lane.b32.xlu0 %v896, 64
    %v1023 = vpop.permute.xlu0 %1022
    %1024 = vrot.lane.b32.xlu0 %v901, 64
    %v1025 = vpop.permute.xlu0 %1024
    %v1027 = vsel %vm416, %v1023, 0
    %v1030 = vsel %vm416, %v1025, 0
    %1032 = vmatpush.bf16.xpose.msra.mxu0 0
    %1033 = vmatpush.bf16.xpose.msra.mxu0 0
    %1034 = vmatpush.bf16.xpose.msra.mxu0 0
    %1035 = vmatpush.bf16.xpose.msra.mxu0 0
    %1036 = vmatpush.bf16.xpose.msra.mxu0 0
    %1037 = vmatpush.bf16.xpose.msra.mxu0 0
    %1038 = vmatpush.bf16.xpose.msra.mxu0 0
    %1039 = vmatpush.bf16.xpose.msra.mxu0 %v1030
    %1040 = vmatmul.bf16.gmra.mxu0 %v1027
    %v1041 = vpop.f32.mrf.mxu0
    %v1042 = vadd.f32 %v835, %v1041
    %v1043 = vpop.f32.mrf.mxu0
    %1044 = vdwg.mxu0
    %v1045 = vsel %vm436, %v1042, -inf
    %1046 = vmax.xlane.f32.xlu0 %v1045
    %v1047 = vpop.xlane.xlu0 %1046
    %v1048 = vsub.f32 %v1042, %v1047
    %v1049 = vmul.f32 %v1048, 1.442695
    %v1050 = vpow.pop %v1049
    %v1051 = vsel %vm436, %v1050, 0.0
    %1052 = vadd.xlane.f32.xlu0 %v1051
    %v1053 = vpop.xlane.xlu0 %1052
    %v1054 = vrcp.pop %v1053
    %v1055 = vmul.f32 %v1050, %v1054
    %s1056 = scalar_lea.vmem [#allocation15], 48
    %1057 = vst.msk [vmem:[%s1056] sm:$0xff] %vm436, %v1055
    %v1058 = vpack.c.bf16 %v1055, %v1055
    %1059 = vrot.lane.b32.xlu0 %v939, 64
    %v1060 = vpop.permute.xlu0 %1059
    %v1062 = vsel %vm436, %v1058, 0
    %v1065 = vsel %vm453, %v1060, 0
    %1067 = vmatpush.bf16.msra.mxu0 0
    %1068 = vmatpush.bf16.msra.mxu0 0
    %1069 = vmatpush.bf16.msra.mxu0 0
    %1070 = vmatpush.bf16.msra.mxu0 0
    %1071 = vmatpush.bf16.msra.mxu0 0
    %1072 = vmatpush.bf16.msra.mxu0 0
    %1073 = vmatpush.bf16.msra.mxu0 0
    %1074 = vmatpush.bf16.msra.mxu0 %v1065
    %1075 = vmatmul.bf16.gmra.mxu0 %v1062
    %v1076 = vpop.f32.mrf.mxu0
    %v1077 = vadd.f32 0.0, %v1076
    %v1078 = vpop.f32.mrf.mxu0
    %1079 = vdwg.mxu0
    %v1080 = vpack.c.bf16 %v1077, %v1077
    %v1081 = vld [vmem:[%s663] sm:$0xf]
    %v1082 = vld [vmem:[%s663 + $0x4] sm:$0xf]
    %v1083 = vld [vmem:[%s663 + $0x8] sm:$0xf]
    %v1084 = vld [vmem:[%s663 + $0xc] sm:$0xf]
    %v1089 = vunpack.c.l.b16 %v1081
    %v1090 = vunpack.c.l.b16 %v1082
    %v1091 = vunpack.c.l.b16 %v1083
    %v1092 = vunpack.c.l.b16 %v1084
    %v1093 = vpack.c.b16 %v1090, %v1089
    %v1094 = vpack.c.b16 %v1092, %v1091
    %v1098 = vsel %vm416, %v1080, 0
    %1100 = vmatpush.bf16.msra.mxu0 0
    %1101 = vmatpush.bf16.msra.mxu0 0
    %1102 = vmatpush.bf16.msra.mxu0 0
    %1103 = vmatpush.bf16.msra.mxu0 0
    %1104 = vmatpush.bf16.msra.mxu0 0
    %1105 = vmatpush.bf16.msra.mxu0 0
    %1106 = vmatpush.bf16.msra.mxu0 %v1094
    %1107 = vmatpush.bf16.msra.mxu0 %v1093
    %1108 = vmatmul.bf16.gmra.mxu0 %v1098
    %v1109 = vpop.f32.mrf.mxu0
    %v1110 = vadd.f32 0.0, %v1109
    %v1111 = vpop.f32.mrf.mxu0
    %1112 = vdwg.mxu0
    %v1113 = vadd.f32 %v1019, %v1110
    %1114 = vrot.lane.b32.xlu0 %v896, 32
    %v1115 = vpop.permute.xlu0 %1114
    %1116 = vrot.lane.b32.xlu0 %v901, 32
    %v1117 = vpop.permute.xlu0 %1116
    %v1119 = vsel %vm416, %v1115, 0
    %v1122 = vsel %vm416, %v1117, 0
    %1124 = vmatpush.bf16.xpose.msra.mxu0 0
    %1125 = vmatpush.bf16.xpose.msra.mxu0 0
    %1126 = vmatpush.bf16.xpose.msra.mxu0 0
    %1127 = vmatpush.bf16.xpose.msra.mxu0 0
    %1128 = vmatpush.bf16.xpose.msra.mxu0 0
    %1129 = vmatpush.bf16.xpose.msra.mxu0 0
    %1130 = vmatpush.bf16.xpose.msra.mxu0 0
    %1131 = vmatpush.bf16.xpose.msra.mxu0 %v1122
    %1132 = vmatmul.bf16.gmra.mxu0 %v1119
    %v1133 = vpop.f32.mrf.mxu0
    %v1134 = vadd.f32 %v835, %v1133
    %v1135 = vpop.f32.mrf.mxu0
    %1136 = vdwg.mxu0
    %v1137 = vsel %vm436, %v1134, -inf
    %1138 = vmax.xlane.f32.xlu0 %v1137
    %v1139 = vpop.xlane.xlu0 %1138
    %v1140 = vsub.f32 %v1134, %v1139
    %v1141 = vmul.f32 %v1140, 1.442695
    %v1142 = vpow.pop %v1141
    %v1143 = vsel %vm436, %v1142, 0.0
    %1144 = vadd.xlane.f32.xlu0 %v1143
    %v1145 = vpop.xlane.xlu0 %1144
    %v1146 = vrcp.pop %v1145
    %v1147 = vmul.f32 %v1142, %v1146
    %s1148 = scalar_lea.vmem [#allocation15], 56
    %1149 = vst.msk [vmem:[%s1148] sm:$0xff] %vm436, %v1147
    %v1150 = vpack.c.bf16 %v1147, %v1147
    %1151 = vrot.lane.b32.xlu0 %v939, 32
    %v1152 = vpop.permute.xlu0 %1151
    %v1154 = vsel %vm436, %v1150, 0
    %v1157 = vsel %vm453, %v1152, 0
    %1159 = vmatpush.bf16.msra.mxu0 0
    %1160 = vmatpush.bf16.msra.mxu0 0
    %1161 = vmatpush.bf16.msra.mxu0 0
    %1162 = vmatpush.bf16.msra.mxu0 0
    %1163 = vmatpush.bf16.msra.mxu0 0
    %1164 = vmatpush.bf16.msra.mxu0 0
    %1165 = vmatpush.bf16.msra.mxu0 0
    %1166 = vmatpush.bf16.msra.mxu0 %v1157
    %1167 = vmatmul.bf16.gmra.mxu0 %v1154
    %v1168 = vpop.f32.mrf.mxu0
    %v1169 = vadd.f32 0.0, %v1168
    %v1170 = vpop.f32.mrf.mxu0
    %1171 = vdwg.mxu0
    %v1172 = vpack.c.bf16 %v1169, %v1169
    %v1173 = vld [vmem:[%s756] sm:$0xf]
    %v1174 = vld [vmem:[%s756 + $0x4] sm:$0xf]
    %v1175 = vld [vmem:[%s756 + $0x8] sm:$0xf]
    %v1176 = vld [vmem:[%s756 + $0xc] sm:$0xf]
    %v1181 = vunpack.c.l.b16 %v1173
    %v1182 = vunpack.c.l.b16 %v1174
    %v1183 = vunpack.c.l.b16 %v1175
    %v1184 = vunpack.c.l.b16 %v1176
    %v1185 = vpack.c.b16 %v1182, %v1181
    %v1186 = vpack.c.b16 %v1184, %v1183
    %v1190 = vsel %vm416, %v1172, 0
    %1192 = vmatpush.bf16.msra.mxu0 0
    %1193 = vmatpush.bf16.msra.mxu0 0
    %1194 = vmatpush.bf16.msra.mxu0 0
    %1195 = vmatpush.bf16.msra.mxu0 0
    %1196 = vmatpush.bf16.msra.mxu0 0
    %1197 = vmatpush.bf16.msra.mxu0 0
    %1198 = vmatpush.bf16.msra.mxu0 %v1186
    %1199 = vmatpush.bf16.msra.mxu0 %v1185
    %1200 = vmatmul.bf16.gmra.mxu0 %v1190
    %v1201 = vpop.f32.mrf.mxu0
    %v1202 = vadd.f32 0.0, %v1201
    %v1203 = vpop.f32.mrf.mxu0
    %1204 = vdwg.mxu0
    %v1205 = vadd.f32 %v1113, %v1202
    %v1206 = vld [vmem:[%s9] sm:$0x1]
    %v1208 = vperm.slane %v1206, 0
    %v1210 = vadd.f32 %v1205, %v1208
    %v1211 = vadd.f32 %v1210, %v156
    %1212 = vadd.xlane.f32.xlu0 %v1211
    %v1213 = vpop.xlane.xlu0 %1212
    %v1214 = vmul.f32 %v1213, %v804
    %v1215 = vsub.f32 %v1211, %v1214
    %v1216 = vmul.f32 %v1215, %v1215
    %1217 = vadd.xlane.f32.xlu0 %v1216
    %v1218 = vpop.xlane.xlu0 %1217
    %v1219 = vmul.f32 %v1218, %v804
    %v1220 = vadd.f32 %v1219, 1e-12
    %v1221 = vrsqrt.pop %v1220
    %v1222 = vmul.f32 %v1221, %v1220
    %v1223 = vmul.f32 %v1222, %v1221
    %v1224 = vmul.f32 0.5, %v1223
    %v1225 = vsub.f32 1.5, %v1224
    %v1226 = vmul.f32 %v1221, %v1225
    %vm1227 = vweird.f32 %v1220
    %vm1228 = vweird.f32 %v1221
    %vm1229 = vmor %vm1227, %vm1228
    %v1230 = vsel %vm1229, %v1221, %v1226
    %v1231 = vmul.f32 %v1215, %v1230
    %v1232 = vld [vmem:[%s10] sm:$0x1]
    %v1234 = vperm.slane %v1232, 0
    %v1236 = vmul.f32 %v1231, %v1234
    %v1237 = vld [vmem:[%s11] sm:$0x1]
    %v1239 = vperm.slane %v1237, 0
    %v1241 = vadd.f32 %v1236, %v1239
    %1242 = vst [vmem:[#allocation14 + $0x8] sm:$0xff] %v1241
    // Predicated region
    $region78: #{tpu_custom_call.1} parent=1 // pred_check
      _
    $region79: #{tpu_custom_call.1} parent=1 // pred_check_branch
      %1244 = sbr.rel (0) target = $region81
    $region80: #{tpu_custom_call.1} parent=1 // pred_region
      %1246 = vsyncadd [#allocation4], 0
      %s1247 = sshll.u32 [#allocation14], 4
      %s1248 = int_to_ptr.vmem [resolvable:$true] %s1247
      %s1249 = sshll.u32 %s12, 4
      %s1250 = int_to_ptr.hbm [resolvable:$true] %s1249
      %1255 = dma.vmem_to_hbm [thread:$0]  %s1248, 256, %s1250, [#allocation4], 128, 128, 8
    $region81: #{tpu_custom_call.1} parent=1 // pred_fallthru
      _
    // Predicated region
    $region82: #{tpu_custom_call.1} parent=1 // pred_check
      _
    $region83: #{tpu_custom_call.1} parent=1 // pred_check_branch
      %1257 = sbr.rel (0) target = $region85
    $region84: #{tpu_custom_call.1} parent=1 // pred_region
      %1259 = vsyncadd [#allocation16], 0
      %s1260 = sshll.u32 [#allocation15], 4
      %s1261 = int_to_ptr.vmem [resolvable:$true] %s1260
      %s1262 = sshll.u32 %s13, 4
      %s1263 = int_to_ptr.hbm [resolvable:$true] %s1262
      %1268 = dma.vmem_to_hbm [thread:$0]  %s1261, 1024, %s1263, [#allocation16], 128, 128, 8
    $region85: #{tpu_custom_call.1} parent=1 // pred_fallthru
      _
    // Predicated region
    $region86: #{tpu_custom_call.1} parent=1 // pred_check
      _
    $region87: #{tpu_custom_call.1} parent=1 // pred_check_branch
      %1270 = sbr.rel (0) target = $region89
    $region88: #{tpu_custom_call.1} parent=1 // pred_region
      %1272 = dma.done [#allocation4], 256
    $region89: #{tpu_custom_call.1} parent=1 // pred_fallthru
      _
    // Predicated region
    $region90: #{tpu_custom_call.1} parent=1 // pred_check
      _
    $region91: #{tpu_custom_call.1} parent=1 // pred_check_branch
      %1274 = sbr.rel (0) target = $region93
    $region92: #{tpu_custom_call.1} parent=1 // pred_region
      %1276 = dma.done [#allocation16], 1024
    $region93: #{tpu_custom_call.1} parent=1 // pred_fallthru
      _
    %1277 = vsyncpa [#allocation3], 1
    %1278 = vsyncpa [#allocation6], 1
    %1279 = vsyncpa [#allocation9], 1
    %1280 = vsyncpa [#allocation12], 1
    %1281 = vsyncpa [#allocation4], 1
    %1282 = vsyncpa [#allocation16], 1

</llo_original>
